<compile_context>
chip_gen: v5e
topology: v5e:2x2
jax: 0.10.0
libtpu: 0.0.40
codegen_flags: <defaults>
</compile_context>

<pallas_src>
import jax
import jax.numpy as jnp
from jax.experimental import pallas as pl
from jax.experimental.pallas import tpu as pltpu

# ---- model hyper-parameters (small, TPU-friendly) -------------------------
B = 2          # batch
C = 3          # channels
H = W = 16     # spatial
P = 8          # patch size
N_VIS = (H // P) * (W // P)      # 4 visual tokens
PATCH_DIM = C * P * P            # 192  (TODO(synk): pad K to 256 for v6e/v7x MXU if shapes grow)
N_TXT = 8                        # text tokens
D = 128                          # embedding dim (lane-aligned)
FLAT_DIM = C * H * W             # 768


def prepend_tokens_kernel(patches_ref, wvis_ref, bvis_ref,
                          flat_ref, wtxt_ref, btxt_ref,
                          vis_out_ref, txt_out_ref):
    """Two slab matmuls, two slab stores.

    patches_ref: [B*N_VIS, PATCH_DIM]   visual patch pixels (all batches fused)
    wvis_ref:    [PATCH_DIM, D]         patch-embedding weight
    bvis_ref:    [1, D]                 patch-embedding bias
    flat_ref:    [B, FLAT_DIM]          flattened image ("text" features)
    wtxt_ref:    [FLAT_DIM, N_TXT * D]  text projection weight
    btxt_ref:    [1, N_TXT * D]         text token biases, pre-flattened
    vis_out_ref: [B*N_VIS, D]           visual tokens (lane/sublane dense)
    txt_out_ref: [B, N_TXT * D]         text tokens (lane dense)
    """
    # --- visual tokens: one MXU pass over all B*N_VIS rows, one broadcast add
    vis = jnp.dot(patches_ref[...], wvis_ref[...],
                  preferred_element_type=jnp.float32) + bvis_ref[...]
    vis_out_ref[...] = vis.astype(vis_out_ref.dtype)

    # --- text tokens: one MXU pass, one broadcast add, one lane-dense store
    txt = jnp.dot(flat_ref[...], wtxt_ref[...],
                  preferred_element_type=jnp.float32) + btxt_ref[...]
    txt_out_ref[...] = txt.astype(txt_out_ref.dtype)


def prepend_tokens(x, w_vis, b_vis, w_txt, b_txt):
    """x: [B, C, H, W] float32 (NCHW). Returns [B, N_VIS + N_TXT, D]."""
    Bx, Cx, Hx, Wx = x.shape
    # glue: extract non-overlapping P x P patches -> [B*N_VIS, C*P*P]
    patches = x.reshape(Bx, Cx, Hx // P, P, Wx // P, P)
    patches = jnp.transpose(patches, (0, 2, 4, 1, 3, 5))
    patches = patches.reshape(Bx * N_VIS, PATCH_DIM)
    # glue: flatten image for the "text" branch
    flat = x.reshape(Bx, FLAT_DIM)
    # glue: flatten the text bias so the kernel does a single lane-dense add
    b_txt_flat = b_txt.reshape(1, N_TXT * D)

    vmem = pl.BlockSpec(memory_space=pltpu.MemorySpace.VMEM)
    vis_out, txt_out = pl.pallas_call(
        prepend_tokens_kernel,
        out_shape=(jax.ShapeDtypeStruct((Bx * N_VIS, D), jnp.float32),
                   jax.ShapeDtypeStruct((Bx, N_TXT * D), jnp.float32)),
        in_specs=[vmem, vmem, vmem, vmem, vmem, vmem],
        out_specs=(vmem, vmem),
    )(patches, w_vis, b_vis, flat, w_txt, b_txt_flat)

    # wrapper-side reshapes + concat on the token axis (dim=1); these are
    # cheap XLA ops and keep the kernel's stores fully dense/unmasked.
    vis_tokens = vis_out.reshape(Bx, N_VIS, D)
    txt_tokens = txt_out.reshape(Bx, N_TXT, D)
    return jnp.concatenate([vis_tokens, txt_tokens], axis=1)


if __name__ == "__main__":
    key = jax.random.PRNGKey(0)
    kx, k1, k2, k3, k4 = jax.random.split(key, 5)

    x = jax.random.normal(kx, (B, C, H, W), dtype=jnp.float32)

    # deterministic synthetic parameters (shapes implied by the forward pass)
    w_vis = jax.random.normal(k1, (PATCH_DIM, D), dtype=jnp.float32) * 0.02
    b_vis = jax.random.normal(k2, (1, D), dtype=jnp.float32) * 0.02
    w_txt = jax.random.normal(k3, (FLAT_DIM, N_TXT * D), dtype=jnp.float32) * 0.02
    b_txt = jax.random.normal(k4, (N_TXT, D), dtype=jnp.float32) * 0.02

    out = jax.jit(prepend_tokens)(x, w_vis, b_vis, w_txt, b_txt)
    out = jax.block_until_ready(out)

    # reference check in plain JAX (same math, concat on token axis = dim 1)
    patches = x.reshape(B, C, H // P, P, W // P, P)
    patches = jnp.transpose(patches, (0, 2, 4, 1, 3, 5)).reshape(B, N_VIS, PATCH_DIM)
    vis_ref = jnp.einsum("bnp,pd->bnd", patches, w_vis) + b_vis[None]
    txt_ref = (x.reshape(B, FLAT_DIM) @ w_txt).reshape(B, N_TXT, D) + b_txt[None]
    ref = jnp.concatenate([vis_ref, txt_ref], axis=1)

    assert out.shape == (B, N_VIS + N_TXT, D), out.shape
    assert jnp.allclose(out, ref, atol=1e-4, rtol=1e-4)
    print("KERNEL_OK")
</pallas_src>

<mosaic_0001>
module attributes {stable_mosaic.version = 11 : i64} {
  func.func @prepend_tokens_kernel(%arg0: memref<8x192xf32, #tpu.memory_space<vmem>>, %arg1: memref<192x128xf32, #tpu.memory_space<vmem>>, %arg2: memref<1x128xf32, #tpu.memory_space<vmem>>, %arg3: memref<2x768xf32, #tpu.memory_space<vmem>>, %arg4: memref<768x1024xf32, #tpu.memory_space<vmem>>, %arg5: memref<1x1024xf32, #tpu.memory_space<vmem>>, %arg6: memref<8x128xf32, #tpu.memory_space<vmem>>, %arg7: memref<2x1024xf32, #tpu.memory_space<vmem>>) attributes {dimension_semantics = [], scalar_prefetch = 0 : i64, scratch_operands = 0 : i64, tpu.core_type = #tpu.core_type<tc>} {
    %c0 = arith.constant 0 : index
    %c0_0 = arith.constant 0 : index
    %0 = vector.load %arg0[%c0, %c0_0] : memref<8x192xf32, #tpu.memory_space<vmem>>, vector<8x192xf32>
    %c0_1 = arith.constant 0 : index
    %c0_2 = arith.constant 0 : index
    %1 = vector.load %arg1[%c0_1, %c0_2] : memref<192x128xf32, #tpu.memory_space<vmem>>, vector<192x128xf32>
    %cst = arith.constant dense<0.000000e+00> : vector<8x128xf32>
    %2 = tpu.matmul %0, %1, %cst {dimension_numbers = #tpu.dot_dimension_numbers<[1], [0], [0], [1], [0, 0, 1, 1], [], []>} : vector<8x192xf32>, vector<192x128xf32>, vector<8x128xf32> -> vector<8x128xf32>
    %c0_3 = arith.constant 0 : index
    %c0_4 = arith.constant 0 : index
    %3 = vector.load %arg2[%c0_3, %c0_4] : memref<1x128xf32, #tpu.memory_space<vmem>>, vector<1x128xf32>
    %4 = vector.broadcast %3 : vector<1x128xf32> to vector<8x128xf32>
    %5 = arith.addf %2, %4 : vector<8x128xf32>
    %c0_5 = arith.constant 0 : index
    %c0_6 = arith.constant 0 : index
    %6 = vector.load %arg6[%c0_5, %c0_6] : memref<8x128xf32, #tpu.memory_space<vmem>>, vector<8x128xf32>
    tpu.vector_store %arg6[%c0_5, %c0_6], %5 {strides = array<i32>} : memref<8x128xf32, #tpu.memory_space<vmem>>, vector<8x128xf32>,
    %c0_7 = arith.constant 0 : index
    %c0_8 = arith.constant 0 : index
    %7 = vector.load %arg3[%c0_7, %c0_8] : memref<2x768xf32, #tpu.memory_space<vmem>>, vector<2x768xf32>
    %c0_9 = arith.constant 0 : index
    %c0_10 = arith.constant 0 : index
    %8 = vector.load %arg4[%c0_9, %c0_10] : memref<768x1024xf32, #tpu.memory_space<vmem>>, vector<768x1024xf32>
    %cst_11 = arith.constant dense<0.000000e+00> : vector<2x1024xf32>
    %9 = tpu.matmul %7, %8, %cst_11 {dimension_numbers = #tpu.dot_dimension_numbers<[1], [0], [0], [1], [0, 0, 1, 1], [], []>} : vector<2x768xf32>, vector<768x1024xf32>, vector<2x1024xf32> -> vector<2x1024xf32>
    %c0_12 = arith.constant 0 : index
    %c0_13 = arith.constant 0 : index
    %10 = vector.load %arg5[%c0_12, %c0_13] : memref<1x1024xf32, #tpu.memory_space<vmem>>, vector<1x1024xf32>
    %11 = vector.broadcast %10 : vector<1x1024xf32> to vector<2x1024xf32>
    %12 = arith.addf %9, %11 : vector<2x1024xf32>
    %c0_14 = arith.constant 0 : index
    %c0_15 = arith.constant 0 : index
    %13 = vector.load %arg7[%c0_14, %c0_15] : memref<2x1024xf32, #tpu.memory_space<vmem>>, vector<2x1024xf32>
    tpu.vector_store %arg7[%c0_14, %c0_15], %12 {strides = array<i32>} : memref<2x1024xf32, #tpu.memory_space<vmem>>, vector<2x1024xf32>,
    return
  }
}

</mosaic_0001>

<llo_original>
// kernel: prepend_tokens.1
$region0: #{prepend_tokens.1}
  #allocation0 [shape = 'u32[]', space=smem, size = 0x4, offset = 0x4, fixed_abs, tag = 'smem constant byte address 0x4 - core index']
  #allocation1 [shape = 'u32[72,128]{1,0:T(1,128)}', space=vmem, size = 0x9000, scoped, tag = 'internal scratch']
  %s0 = inlined_call_operand.vmem [shape: f32[8,192], index: 0, kind: input, shape index: {}]
  %s1 = inlined_call_operand.hbm [shape: f32[192,128], index: 1, kind: input, shape index: {}]
  %s2 = inlined_call_operand.hbm [shape: f32[1,128], index: 2, kind: input, shape index: {}]
  %s3 = inlined_call_operand.vmem [shape: f32[2,768], index: 3, kind: input, shape index: {}]
  %s4 = inlined_call_operand.hbm [shape: f32[768,1024], index: 4, kind: input, shape index: {}]
  %s5 = inlined_call_operand.hbm [shape: f32[1,1024], index: 5, kind: input, shape index: {}]
  %s6 = inlined_call_operand.vmem [shape: f32[8,128], index: 6, kind: output, shape index: {0}]
  %s7 = inlined_call_operand.vmem [shape: f32[2,1024], index: 7, kind: output, shape index: {1}]
  %8 = xla_tuple %s6, %s7
  %s9 = sld [smem:[#allocation0]]
  $region58: #{prepend_tokens.1} parent=0
    _
  %s11 = ssub.s32 1, %s9
  %s12 = scalar_select 0, %s11, %s9
  $region1: #{prepend_tokens.1} parent=0
    #allocation2 [shape = 'u8[98304]{0}', space=vmem, size = 0x18000, scoped, tag = 'input window, operand 1, single buffered']
    #allocation3 [shape = 's32[1]{0}', space=sflag, size = 0x4, scoped, tag = 'scoped memory for prepend_tokens.1']
    #allocation4 [shape = 'u8[512]{0}', space=vmem, size = 0x400, scoped, tag = 'input window, operand 2, single buffered']
    #allocation5 [shape = 's32[1]{0}', space=sflag, size = 0x4, scoped, tag = 'scoped memory for prepend_tokens.1']
    #allocation6 [shape = 'u8[3145728]{0}', space=vmem, size = 0x300000, scoped, tag = 'input window, operand 4, single buffered']
    #allocation7 [shape = 'u8[4096]{0}', space=vmem, size = 0x1000, scoped, tag = 'input window, operand 5, single buffered']
    #allocation8 [shape = 's32[1]{0}', space=sflag, size = 0x4, scoped, tag = 'scoped memory for prepend_tokens.1']
    %13 = vsyncpa [#allocation3], 0
    %14 = vsyncpa [#allocation5], 0
    %15 = vsyncpa [#allocation8], 0
    // Predicated region
    $region2: #{prepend_tokens.1} parent=1 // pred_check
      _
    $region3: #{prepend_tokens.1} parent=1 // pred_check_branch
      %17 = sbr.rel (0) target = $region5
    $region4: #{prepend_tokens.1} parent=1 // pred_region
      _
    $region5: #{prepend_tokens.1} parent=1 // pred_fallthru
      _
    // Predicated region
    $region6: #{prepend_tokens.1} parent=1 // pred_check
      _
    $region7: #{prepend_tokens.1} parent=1 // pred_check_branch
      %19 = sbr.rel (0) target = $region9
    $region8: #{prepend_tokens.1} parent=1 // pred_region
      %21 = vsyncadd [#allocation3], 0
      %s22 = sshll.u32 %s1, 4
      %s23 = int_to_ptr.hbm [resolvable:$true] %s22
      %s24 = sshll.u32 [#allocation2], 4
      %s25 = int_to_ptr.vmem [resolvable:$true] %s24
      %30 = dma.hbm_to_vmem [thread:$0]  %s23, 3072, %s25, [#allocation3], 128, 128, 8
    $region9: #{prepend_tokens.1} parent=1 // pred_fallthru
      _
    // Predicated region
    $region10: #{prepend_tokens.1} parent=1 // pred_check
      _
    $region11: #{prepend_tokens.1} parent=1 // pred_check_branch
      %32 = sbr.rel (0) target = $region13
    $region12: #{prepend_tokens.1} parent=1 // pred_region
      %34 = vsyncadd [#allocation5], 0
      %s36 = sshll.u32 %s2, 4
      %s37 = int_to_ptr.hbm [resolvable:$true] %s36
      %s38 = sshll.u32 [#allocation4], 4
      %s39 = int_to_ptr.vmem [resolvable:$true] %s38
      %41 = dma.hbm_to_vmem [thread:$0]  %s37, 16, %s39, [#allocation5]
    $region13: #{prepend_tokens.1} parent=1 // pred_fallthru
      _
    // Predicated region
    $region14: #{prepend_tokens.1} parent=1 // pred_check
      _
    $region15: #{prepend_tokens.1} parent=1 // pred_check_branch
      %43 = sbr.rel (0) target = $region17
    $region16: #{prepend_tokens.1} parent=1 // pred_region
      _
    $region17: #{prepend_tokens.1} parent=1 // pred_fallthru
      _
    // Predicated region
    $region18: #{prepend_tokens.1} parent=1 // pred_check
      _
    $region19: #{prepend_tokens.1} parent=1 // pred_check_branch
      %45 = sbr.rel (0) target = $region21
    $region20: #{prepend_tokens.1} parent=1 // pred_region
      %47 = vsyncadd [#allocation5], 0
      %s48 = sshll.u32 %s4, 4
      %s49 = int_to_ptr.hbm [resolvable:$true] %s48
      %s50 = sshll.u32 [#allocation6], 4
      %s51 = int_to_ptr.vmem [resolvable:$true] %s50
      %56 = dma.hbm_to_vmem [thread:$0]  %s49, 98304, %s51, [#allocation5], 1024, 1024, 64
    $region21: #{prepend_tokens.1} parent=1 // pred_fallthru
      _
    // Predicated region
    $region22: #{prepend_tokens.1} parent=1 // pred_check
      _
    $region23: #{prepend_tokens.1} parent=1 // pred_check_branch
      %58 = sbr.rel (0) target = $region25
    $region24: #{prepend_tokens.1} parent=1 // pred_region
      %60 = vsyncadd [#allocation8], 0
      %s62 = sshll.u32 %s5, 4
      %s63 = int_to_ptr.hbm [resolvable:$true] %s62
      %s64 = sshll.u32 [#allocation7], 4
      %s65 = int_to_ptr.vmem [resolvable:$true] %s64
      %67 = dma.hbm_to_vmem [thread:$0]  %s63, 128, %s65, [#allocation8]
    $region25: #{prepend_tokens.1} parent=1 // pred_fallthru
      _
    // Predicated region
    $region26: #{prepend_tokens.1} parent=1 // pred_check
      _
    $region27: #{prepend_tokens.1} parent=1 // pred_check_branch
      %69 = sbr.rel (0) target = $region29
    $region28: #{prepend_tokens.1} parent=1 // pred_region
      %71 = dma.done [#allocation3], 3072
    $region29: #{prepend_tokens.1} parent=1 // pred_fallthru
      _
    // Predicated region
    $region30: #{prepend_tokens.1} parent=1 // pred_check
      _
    $region31: #{prepend_tokens.1} parent=1 // pred_check_branch
      %73 = sbr.rel (0) target = $region33
    $region32: #{prepend_tokens.1} parent=1 // pred_region
      %75 = dma.done [#allocation5], 16
    $region33: #{prepend_tokens.1} parent=1 // pred_fallthru
      _
    // Predicated region
    $region34: #{prepend_tokens.1} parent=1 // pred_check
      _
    $region35: #{prepend_tokens.1} parent=1 // pred_check_branch
      %77 = sbr.rel (0) target = $region37
    $region36: #{prepend_tokens.1} parent=1 // pred_region
      %79 = dma.done [#allocation5], 98304
    $region37: #{prepend_tokens.1} parent=1 // pred_fallthru
      _
    // Predicated region
    $region38: #{prepend_tokens.1} parent=1 // pred_check
      _
    $region39: #{prepend_tokens.1} parent=1 // pred_check_branch
      %81 = sbr.rel (0) target = $region41
    $region40: #{prepend_tokens.1} parent=1 // pred_region
      %83 = dma.done [#allocation8], 128
    $region41: #{prepend_tokens.1} parent=1 // pred_fallthru
      _
    %v84 = vld [vmem:[%s0] sm:$0xff]
    %v85 = vld [vmem:[%s0 + $0x8] sm:$0xff]
    %v86 = vld [vmem:[#allocation2] sm:$0xff]
    %v87 = vld [vmem:[#allocation2 + $0x8] sm:$0xff]
    %v88 = vld [vmem:[#allocation2 + $0x10] sm:$0xff]
    %v89 = vld [vmem:[#allocation2 + $0x18] sm:$0xff]
    %v90 = vld [vmem:[#allocation2 + $0x20] sm:$0xff]
    %v91 = vld [vmem:[#allocation2 + $0x28] sm:$0xff]
    %v92 = vld [vmem:[#allocation2 + $0x30] sm:$0xff]
    %v93 = vld [vmem:[#allocation2 + $0x38] sm:$0xff]
    %v94 = vld [vmem:[#allocation2 + $0x40] sm:$0xff]
    %v95 = vld [vmem:[#allocation2 + $0x48] sm:$0xff]
    %v96 = vld [vmem:[#allocation2 + $0x50] sm:$0xff]
    %v97 = vld [vmem:[#allocation2 + $0x58] sm:$0xff]
    %v98 = vld [vmem:[#allocation2 + $0x60] sm:$0xff]
    %v99 = vld [vmem:[#allocation2 + $0x68] sm:$0xff]
    %v100 = vld [vmem:[#allocation2 + $0x70] sm:$0xff]
    %v101 = vld [vmem:[#allocation2 + $0x78] sm:$0xff]
    %v102 = vld [vmem:[#allocation2 + $0x80] sm:$0xff]
    %v103 = vld [vmem:[#allocation2 + $0x88] sm:$0xff]
    %v104 = vld [vmem:[#allocation2 + $0x90] sm:$0xff]
    %v105 = vld [vmem:[#allocation2 + $0x98] sm:$0xff]
    %v106 = vld [vmem:[#allocation2 + $0xa0] sm:$0xff]
    %v107 = vld [vmem:[#allocation2 + $0xa8] sm:$0xff]
    %v108 = vld [vmem:[#allocation2 + $0xb0] sm:$0xff]
    %v109 = vld [vmem:[#allocation2 + $0xb8] sm:$0xff]
    %v110 = vld [vmem:[#allocation4] sm:$0x1]
    %v112 = vperm.slane %v110, 0
    %vm114 = vcmask 523264
    %v116 = vsel %vm114, %v85, 0
    %118 = vmatpush.msra.mxu0 %v101
    %119 = vmatpush.msra.mxu0 %v100
    %120 = vmatpush.msra.mxu0 %v99
    %121 = vmatpush.msra.mxu0 %v98
    %122 = vmatpush.msra.mxu0 %v97
    %123 = vmatpush.msra.mxu0 %v96
    %124 = vmatpush.msra.mxu0 %v95
    %125 = vmatpush.msra.mxu0 %v94
    %126 = vmatpush.msra.mxu0 %v93
    %127 = vmatpush.msra.mxu0 %v92
    %128 = vmatpush.msra.mxu0 %v91
    %129 = vmatpush.msra.mxu0 %v90
    %130 = vmatpush.msra.mxu0 %v89
    %131 = vmatpush.msra.mxu0 %v88
    %132 = vmatpush.msra.mxu0 %v87
    %133 = vmatpush.msra.mxu0 %v86
    %134 = vmatmul.f32.gmra.mxu0 %v84
    %v135 = vpop.f32.mrf.mxu0
    %v136 = vadd.f32 %v112, %v135
    %137 = vdwg.mxu0
    %138 = vmatpush.msra.mxu0 0.0
    %139 = vmatpush.msra.mxu0 0.0
    %140 = vmatpush.msra.mxu0 0.0
    %141 = vmatpush.msra.mxu0 0.0
    %142 = vmatpush.msra.mxu0 0.0
    %143 = vmatpush.msra.mxu0 0.0
    %144 = vmatpush.msra.mxu0 0.0
    %145 = vmatpush.msra.mxu0 0.0
    %146 = vmatpush.msra.mxu0 %v109
    %147 = vmatpush.msra.mxu0 %v108
    %148 = vmatpush.msra.mxu0 %v107
    %149 = vmatpush.msra.mxu0 %v106
    %150 = vmatpush.msra.mxu0 %v105
    %151 = vmatpush.msra.mxu0 %v104
    %152 = vmatpush.msra.mxu0 %v103
    %153 = vmatpush.msra.mxu0 %v102
    %154 = vmatmul.f32.gmra.mxu0 %v116
    %v155 = vpop.f32.mrf.mxu0
    %v156 = vadd.f32 %v136, %v155
    %157 = vdwg.mxu0
    %158 = vst [vmem:[%s6] sm:$0xff] %v156
    %v159 = vld [vmem:[%s3] sm:$0xff]
    %v160 = vld [vmem:[%s3 + $0x8] sm:$0xf]
    %v161 = vld [vmem:[#allocation6] sm:$0xff]
    %v162 = vld [vmem:[#allocation6 + $0x8] sm:$0xff]
    %v163 = vld [vmem:[#allocation6 + $0x10] sm:$0xff]
    %v164 = vld [vmem:[#allocation6 + $0x18] sm:$0xff]
    %v165 = vld [vmem:[#allocation6 + $0x20] sm:$0xff]
    %v166 = vld [vmem:[#allocation6 + $0x28] sm:$0xff]
    %v167 = vld [vmem:[#allocation6 + $0x30] sm:$0xff]
    %v168 = vld [vmem:[#allocation6 + $0x38] sm:$0xff]
    %v169 = vld [vmem:[#allocation6 + $0x40] sm:$0xff]
    %v170 = vld [vmem:[#allocation6 + $0x48] sm:$0xff]
    %v171 = vld [vmem:[#allocation6 + $0x50] sm:$0xff]
    %v172 = vld [vmem:[#allocation6 + $0x58] sm:$0xff]
    %v173 = vld [vmem:[#allocation6 + $0x60] sm:$0xff]
    %v174 = vld [vmem:[#allocation6 + $0x68] sm:$0xff]
    %v175 = vld [vmem:[#allocation6 + $0x70] sm:$0xff]
    %v176 = vld [vmem:[#allocation6 + $0x78] sm:$0xff]
    %v177 = vld [vmem:[#allocation6 + $0x80] sm:$0xff]
    %v178 = vld [vmem:[#allocation6 + $0x88] sm:$0xff]
    %v179 = vld [vmem:[#allocation6 + $0x90] sm:$0xff]
    %v180 = vld [vmem:[#allocation6 + $0x98] sm:$0xff]
    %v181 = vld [vmem:[#allocation6 + $0xa0] sm:$0xff]
    %v182 = vld [vmem:[#allocation6 + $0xa8] sm:$0xff]
    %v183 = vld [vmem:[#allocation6 + $0xb0] sm:$0xff]
    %v184 = vld [vmem:[#allocation6 + $0xb8] sm:$0xff]
    %v185 = vld [vmem:[#allocation6 + $0xc0] sm:$0xff]
    %v186 = vld [vmem:[#allocation6 + $0xc8] sm:$0xff]
    %v187 = vld [vmem:[#allocation6 + $0xd0] sm:$0xff]
    %v188 = vld [vmem:[#allocation6 + $0xd8] sm:$0xff]
    %v189 = vld [vmem:[#allocation6 + $0xe0] sm:$0xff]
    %v190 = vld [vmem:[#allocation6 + $0xe8] sm:$0xff]
    %v191 = vld [vmem:[#allocation6 + $0xf0] sm:$0xff]
    %v192 = vld [vmem:[#allocation6 + $0xf8] sm:$0xff]
    %v193 = vld [vmem:[#allocation6 + $0x100] sm:$0xff]
    %v194 = vld [vmem:[#allocation6 + $0x108] sm:$0xff]
    %v195 = vld [vmem:[#allocation6 + $0x110] sm:$0xff]
    %v196 = vld [vmem:[#allocation6 + $0x118] sm:$0xff]
    %v197 = vld [vmem:[#allocation6 + $0x120] sm:$0xff]
    %v198 = vld [vmem:[#allocation6 + $0x128] sm:$0xff]
    %v199 = vld [vmem:[#allocation6 + $0x130] sm:$0xff]
    %v200 = vld [vmem:[#allocation6 + $0x138] sm:$0xff]
    %v201 = vld [vmem:[#allocation6 + $0x140] sm:$0xff]
    %v202 = vld [vmem:[#allocation6 + $0x148] sm:$0xff]
    %v203 = vld [vmem:[#allocation6 + $0x150] sm:$0xff]
    %v204 = vld [vmem:[#allocation6 + $0x158] sm:$0xff]
    %v205 = vld [vmem:[#allocation6 + $0x160] sm:$0xff]
    %v206 = vld [vmem:[#allocation6 + $0x168] sm:$0xff]
    %v207 = vld [vmem:[#allocation6 + $0x170] sm:$0xff]
    %v208 = vld [vmem:[#allocation6 + $0x178] sm:$0xff]
    %v209 = vld [vmem:[#allocation6 + $0x180] sm:$0xff]
    %v210 = vld [vmem:[#allocation6 + $0x188] sm:$0xff]
    %v211 = vld [vmem:[#allocation6 + $0x190] sm:$0xff]
    %v212 = vld [vmem:[#allocation6 + $0x198] sm:$0xff]
    %v213 = vld [vmem:[#allocation6 + $0x1a0] sm:$0xff]
    %v214 = vld [vmem:[#allocation6 + $0x1a8] sm:$0xff]
    %v215 = vld [vmem:[#allocation6 + $0x1b0] sm:$0xff]
    %v216 = vld [vmem:[#allocation6 + $0x1b8] sm:$0xff]
    %v217 = vld [vmem:[#allocation6 + $0x1c0] sm:$0xff]
    %v218 = vld [vmem:[#allocation6 + $0x1c8] sm:$0xff]
    %v219 = vld [vmem:[#allocation6 + $0x1d0] sm:$0xff]
    %v220 = vld [vmem:[#allocation6 + $0x1d8] sm:$0xff]
    %v221 = vld [vmem:[#allocation6 + $0x1e0] sm:$0xff]
    %v222 = vld [vmem:[#allocation6 + $0x1e8] sm:$0xff]
    %v223 = vld [vmem:[#allocation6 + $0x1f0] sm:$0xff]
    %v224 = vld [vmem:[#allocation6 + $0x1f8] sm:$0xff]
    %v225 = vld [vmem:[#allocation6 + $0x200] sm:$0xff]
    %v226 = vld [vmem:[#allocation6 + $0x208] sm:$0xff]
    %v227 = vld [vmem:[#allocation6 + $0x210] sm:$0xff]
    %v228 = vld [vmem:[#allocation6 + $0x218] sm:$0xff]
    %v229 = vld [vmem:[#allocation6 + $0x220] sm:$0xff]
    %v230 = vld [vmem:[#allocation6 + $0x228] sm:$0xff]
    %v231 = vld [vmem:[#allocation6 + $0x230] sm:$0xff]
    %v232 = vld [vmem:[#allocation6 + $0x238] sm:$0xff]
    %v233 = vld [vmem:[#allocation6 + $0x240] sm:$0xff]
    %v234 = vld [vmem:[#allocation6 + $0x248] sm:$0xff]
    %v235 = vld [vmem:[#allocation6 + $0x250] sm:$0xff]
    %v236 = vld [vmem:[#allocation6 + $0x258] sm:$0xff]
    %v237 = vld [vmem:[#allocation6 + $0x260] sm:$0xff]
    %v238 = vld [vmem:[#allocation6 + $0x268] sm:$0xff]
    %v239 = vld [vmem:[#allocation6 + $0x270] sm:$0xff]
    %v240 = vld [vmem:[#allocation6 + $0x278] sm:$0xff]
    %v241 = vld [vmem:[#allocation6 + $0x280] sm:$0xff]
    %v242 = vld [vmem:[#allocation6 + $0x288] sm:$0xff]
    %v243 = vld [vmem:[#allocation6 + $0x290] sm:$0xff]
    %v244 = vld [vmem:[#allocation6 + $0x298] sm:$0xff]
    %v245 = vld [vmem:[#allocation6 + $0x2a0] sm:$0xff]
    %v246 = vld [vmem:[#allocation6 + $0x2a8] sm:$0xff]
    %v247 = vld [vmem:[#allocation6 + $0x2b0] sm:$0xff]
    %v248 = vld [vmem:[#allocation6 + $0x2b8] sm:$0xff]
    %v249 = vld [vmem:[#allocation6 + $0x2c0] sm:$0xff]
    %v250 = vld [vmem:[#allocation6 + $0x2c8] sm:$0xff]
    %v251 = vld [vmem:[#allocation6 + $0x2d0] sm:$0xff]
    %v252 = vld [vmem:[#allocation6 + $0x2d8] sm:$0xff]
    %v253 = vld [vmem:[#allocation6 + $0x2e0] sm:$0xff]
    %v254 = vld [vmem:[#allocation6 + $0x2e8] sm:$0xff]
    %v255 = vld [vmem:[#allocation6 + $0x2f0] sm:$0xff]
    %v256 = vld [vmem:[#allocation6 + $0x2f8] sm:$0xff]
    %v257 = vld [vmem:[#allocation6 + $0x300] sm:$0xff]
    %v258 = vld [vmem:[#allocation6 + $0x308] sm:$0xff]
    %v259 = vld [vmem:[#allocation6 + $0x310] sm:$0xff]
    %v260 = vld [vmem:[#allocation6 + $0x318] sm:$0xff]
    %v261 = vld [vmem:[#allocation6 + $0x320] sm:$0xff]
    %v262 = vld [vmem:[#allocation6 + $0x328] sm:$0xff]
    %v263 = vld [vmem:[#allocation6 + $0x330] sm:$0xff]
    %v264 = vld [vmem:[#allocation6 + $0x338] sm:$0xff]
    %v265 = vld [vmem:[#allocation6 + $0x340] sm:$0xff]
    %v266 = vld [vmem:[#allocation6 + $0x348] sm:$0xff]
    %v267 = vld [vmem:[#allocation6 + $0x350] sm:$0xff]
    %v268 = vld [vmem:[#allocation6 + $0x358] sm:$0xff]
    %v269 = vld [vmem:[#allocation6 + $0x360] sm:$0xff]
    %v270 = vld [vmem:[#allocation6 + $0x368] sm:$0xff]
    %v271 = vld [vmem:[#allocation6 + $0x370] sm:$0xff]
    %v272 = vld [vmem:[#allocation6 + $0x378] sm:$0xff]
    %v273 = vld [vmem:[#allocation6 + $0x380] sm:$0xff]
    %v274 = vld [vmem:[#allocation6 + $0x388] sm:$0xff]
    %v275 = vld [vmem:[#allocation6 + $0x390] sm:$0xff]
    %v276 = vld [vmem:[#allocation6 + $0x398] sm:$0xff]
    %v277 = vld [vmem:[#allocation6 + $0x3a0] sm:$0xff]
    %v278 = vld [vmem:[#allocation6 + $0x3a8] sm:$0xff]
    %v279 = vld [vmem:[#allocation6 + $0x3b0] sm:$0xff]
    %v280 = vld [vmem:[#allocation6 + $0x3b8] sm:$0xff]
    %v281 = vld [vmem:[#allocation6 + $0x3c0] sm:$0xff]
    %v282 = vld [vmem:[#allocation6 + $0x3c8] sm:$0xff]
    %v283 = vld [vmem:[#allocation6 + $0x3d0] sm:$0xff]
    %v284 = vld [vmem:[#allocation6 + $0x3d8] sm:$0xff]
    %v285 = vld [vmem:[#allocation6 + $0x3e0] sm:$0xff]
    %v286 = vld [vmem:[#allocation6 + $0x3e8] sm:$0xff]
    %v287 = vld [vmem:[#allocation6 + $0x3f0] sm:$0xff]
    %v288 = vld [vmem:[#allocation6 + $0x3f8] sm:$0xff]
    %v289 = vld [vmem:[#allocation6 + $0x400] sm:$0xff]
    %v290 = vld [vmem:[#allocation6 + $0x408] sm:$0xff]
    %v291 = vld [vmem:[#allocation6 + $0x410] sm:$0xff]
    %v292 = vld [vmem:[#allocation6 + $0x418] sm:$0xff]
    %v293 = vld [vmem:[#allocation6 + $0x420] sm:$0xff]
    %v294 = vld [vmem:[#allocation6 + $0x428] sm:$0xff]
    %v295 = vld [vmem:[#allocation6 + $0x430] sm:$0xff]
    %v296 = vld [vmem:[#allocation6 + $0x438] sm:$0xff]
    %v297 = vld [vmem:[#allocation6 + $0x440] sm:$0xff]
    %v298 = vld [vmem:[#allocation6 + $0x448] sm:$0xff]
    %v299 = vld [vmem:[#allocation6 + $0x450] sm:$0xff]
    %v300 = vld [vmem:[#allocation6 + $0x458] sm:$0xff]
    %v301 = vld [vmem:[#allocation6 + $0x460] sm:$0xff]
    %v302 = vld [vmem:[#allocation6 + $0x468] sm:$0xff]
    %v303 = vld [vmem:[#allocation6 + $0x470] sm:$0xff]
    %v304 = vld [vmem:[#allocation6 + $0x478] sm:$0xff]
    %v305 = vld [vmem:[#allocation6 + $0x480] sm:$0xff]
    %v306 = vld [vmem:[#allocation6 + $0x488] sm:$0xff]
    %v307 = vld [vmem:[#allocation6 + $0x490] sm:$0xff]
    %v308 = vld [vmem:[#allocation6 + $0x498] sm:$0xff]
    %v309 = vld [vmem:[#allocation6 + $0x4a0] sm:$0xff]
    %v310 = vld [vmem:[#allocation6 + $0x4a8] sm:$0xff]
    %v311 = vld [vmem:[#allocation6 + $0x4b0] sm:$0xff]
    %v312 = vld [vmem:[#allocation6 + $0x4b8] sm:$0xff]
    %v313 = vld [vmem:[#allocation6 + $0x4c0] sm:$0xff]
    %v314 = vld [vmem:[#allocation6 + $0x4c8] sm:$0xff]
    %v315 = vld [vmem:[#allocation6 + $0x4d0] sm:$0xff]
    %v316 = vld [vmem:[#allocation6 + $0x4d8] sm:$0xff]
    %v317 = vld [vmem:[#allocation6 + $0x4e0] sm:$0xff]
    %v318 = vld [vmem:[#allocation6 + $0x4e8] sm:$0xff]
    %v319 = vld [vmem:[#allocation6 + $0x4f0] sm:$0xff]
    %v320 = vld [vmem:[#allocation6 + $0x4f8] sm:$0xff]
    %v321 = vld [vmem:[#allocation6 + $0x500] sm:$0xff]
    %v322 = vld [vmem:[#allocation6 + $0x508] sm:$0xff]
    %v323 = vld [vmem:[#allocation6 + $0x510] sm:$0xff]
    %v324 = vld [vmem:[#allocation6 + $0x518] sm:$0xff]
    %v325 = vld [vmem:[#allocation6 + $0x520] sm:$0xff]
    %v326 = vld [vmem:[#allocation6 + $0x528] sm:$0xff]
    %v327 = vld [vmem:[#allocation6 + $0x530] sm:$0xff]
    %v328 = vld [vmem:[#allocation6 + $0x538] sm:$0xff]
    %v329 = vld [vmem:[#allocation6 + $0x540] sm:$0xff]
    %v330 = vld [vmem:[#allocation6 + $0x548] sm:$0xff]
    %v331 = vld [vmem:[#allocation6 + $0x550] sm:$0xff]
    %v332 = vld [vmem:[#allocation6 + $0x558] sm:$0xff]
    %v333 = vld [vmem:[#allocation6 + $0x560] sm:$0xff]
    %v334 = vld [vmem:[#allocation6 + $0x568] sm:$0xff]
    %v335 = vld [vmem:[#allocation6 + $0x570] sm:$0xff]
    %v336 = vld [vmem:[#allocation6 + $0x578] sm:$0xff]
    %v337 = vld [vmem:[#allocation6 + $0x580] sm:$0xff]
    %v338 = vld [vmem:[#allocation6 + $0x588] sm:$0xff]
    %v339 = vld [vmem:[#allocation6 + $0x590] sm:$0xff]
    %v340 = vld [vmem:[#allocation6 + $0x598] sm:$0xff]
    %v341 = vld [vmem:[#allocation6 + $0x5a0] sm:$0xff]
    %v342 = vld [vmem:[#allocation6 + $0x5a8] sm:$0xff]
    %v343 = vld [vmem:[#allocation6 + $0x5b0] sm:$0xff]
    %v344 = vld [vmem:[#allocation6 + $0x5b8] sm:$0xff]
    %v345 = vld [vmem:[#allocation6 + $0x5c0] sm:$0xff]
    %v346 = vld [vmem:[#allocation6 + $0x5c8] sm:$0xff]
    %v347 = vld [vmem:[#allocation6 + $0x5d0] sm:$0xff]
    %v348 = vld [vmem:[#allocation6 + $0x5d8] sm:$0xff]
    %v349 = vld [vmem:[#allocation6 + $0x5e0] sm:$0xff]
    %v350 = vld [vmem:[#allocation6 + $0x5e8] sm:$0xff]
    %v351 = vld [vmem:[#allocation6 + $0x5f0] sm:$0xff]
    %v352 = vld [vmem:[#allocation6 + $0x5f8] sm:$0xff]
    %v353 = vld [vmem:[#allocation6 + $0x600] sm:$0xff]
    %v354 = vld [vmem:[#allocation6 + $0x608] sm:$0xff]
    %v355 = vld [vmem:[#allocation6 + $0x610] sm:$0xff]
    %v356 = vld [vmem:[#allocation6 + $0x618] sm:$0xff]
    %v357 = vld [vmem:[#allocation6 + $0x620] sm:$0xff]
    %v358 = vld [vmem:[#allocation6 + $0x628] sm:$0xff]
    %v359 = vld [vmem:[#allocation6 + $0x630] sm:$0xff]
    %v360 = vld [vmem:[#allocation6 + $0x638] sm:$0xff]
    %v361 = vld [vmem:[#allocation6 + $0x640] sm:$0xff]
    %v362 = vld [vmem:[#allocation6 + $0x648] sm:$0xff]
    %v363 = vld [vmem:[#allocation6 + $0x650] sm:$0xff]
    %v364 = vld [vmem:[#allocation6 + $0x658] sm:$0xff]
    %v365 = vld [vmem:[#allocation6 + $0x660] sm:$0xff]
    %v366 = vld [vmem:[#allocation6 + $0x668] sm:$0xff]
    %v367 = vld [vmem:[#allocation6 + $0x670] sm:$0xff]
    %v368 = vld [vmem:[#allocation6 + $0x678] sm:$0xff]
    %v369 = vld [vmem:[#allocation6 + $0x680] sm:$0xff]
    %v370 = vld [vmem:[#allocation6 + $0x688] sm:$0xff]
    %v371 = vld [vmem:[#allocation6 + $0x690] sm:$0xff]
    %v372 = vld [vmem:[#allocation6 + $0x698] sm:$0xff]
    %v373 = vld [vmem:[#allocation6 + $0x6a0] sm:$0xff]
    %v374 = vld [vmem:[#allocation6 + $0x6a8] sm:$0xff]
    %v375 = vld [vmem:[#allocation6 + $0x6b0] sm:$0xff]
    %v376 = vld [vmem:[#allocation6 + $0x6b8] sm:$0xff]
    %v377 = vld [vmem:[#allocation6 + $0x6c0] sm:$0xff]
    %v378 = vld [vmem:[#allocation6 + $0x6c8] sm:$0xff]
    %v379 = vld [vmem:[#allocation6 + $0x6d0] sm:$0xff]
    %v380 = vld [vmem:[#allocation6 + $0x6d8] sm:$0xff]
    %v381 = vld [vmem:[#allocation6 + $0x6e0] sm:$0xff]
    %v382 = vld [vmem:[#allocation6 + $0x6e8] sm:$0xff]
    %v383 = vld [vmem:[#allocation6 + $0x6f0] sm:$0xff]
    %v384 = vld [vmem:[#allocation6 + $0x6f8] sm:$0xff]
    %v385 = vld [vmem:[#allocation6 + $0x700] sm:$0xff]
    %v386 = vld [vmem:[#allocation6 + $0x708] sm:$0xff]
    %v387 = vld [vmem:[#allocation6 + $0x710] sm:$0xff]
    %v388 = vld [vmem:[#allocation6 + $0x718] sm:$0xff]
    %v389 = vld [vmem:[#allocation6 + $0x720] sm:$0xff]
    %v390 = vld [vmem:[#allocation6 + $0x728] sm:$0xff]
    %v391 = vld [vmem:[#allocation6 + $0x730] sm:$0xff]
    %v392 = vld [vmem:[#allocation6 + $0x738] sm:$0xff]
    %v393 = vld [vmem:[#allocation6 + $0x740] sm:$0xff]
    %v394 = vld [vmem:[#allocation6 + $0x748] sm:$0xff]
    %v395 = vld [vmem:[#allocation6 + $0x750] sm:$0xff]
    %v396 = vld [vmem:[#allocation6 + $0x758] sm:$0xff]
    %v397 = vld [vmem:[#allocation6 + $0x760] sm:$0xff]
    %v398 = vld [vmem:[#allocation6 + $0x768] sm:$0xff]
    %v399 = vld [vmem:[#allocation6 + $0x770] sm:$0xff]
    %v400 = vld [vmem:[#allocation6 + $0x778] sm:$0xff]
    %v401 = vld [vmem:[#allocation6 + $0x780] sm:$0xff]
    %v402 = vld [vmem:[#allocation6 + $0x788] sm:$0xff]
    %v403 = vld [vmem:[#allocation6 + $0x790] sm:$0xff]
    %v404 = vld [vmem:[#allocation6 + $0x798] sm:$0xff]
    %v405 = vld [vmem:[#allocation6 + $0x7a0] sm:$0xff]
    %v406 = vld [vmem:[#allocation6 + $0x7a8] sm:$0xff]
    %v407 = vld [vmem:[#allocation6 + $0x7b0] sm:$0xff]
    %v408 = vld [vmem:[#allocation6 + $0x7b8] sm:$0xff]
    %v409 = vld [vmem:[#allocation6 + $0x7c0] sm:$0xff]
    %v410 = vld [vmem:[#allocation6 + $0x7c8] sm:$0xff]
    %v411 = vld [vmem:[#allocation6 + $0x7d0] sm:$0xff]
    %v412 = vld [vmem:[#allocation6 + $0x7d8] sm:$0xff]
    %v413 = vld [vmem:[#allocation6 + $0x7e0] sm:$0xff]
    %v414 = vld [vmem:[#allocation6 + $0x7e8] sm:$0xff]
    %v415 = vld [vmem:[#allocation6 + $0x7f0] sm:$0xff]
    %v416 = vld [vmem:[#allocation6 + $0x7f8] sm:$0xff]
    %v417 = vld [vmem:[#allocation6 + $0x800] sm:$0xff]
    %v418 = vld [vmem:[#allocation6 + $0x808] sm:$0xff]
    %v419 = vld [vmem:[#allocation6 + $0x810] sm:$0xff]
    %v420 = vld [vmem:[#allocation6 + $0x818] sm:$0xff]
    %v421 = vld [vmem:[#allocation6 + $0x820] sm:$0xff]
    %v422 = vld [vmem:[#allocation6 + $0x828] sm:$0xff]
    %v423 = vld [vmem:[#allocation6 + $0x830] sm:$0xff]
    %v424 = vld [vmem:[#allocation6 + $0x838] sm:$0xff]
    %v425 = vld [vmem:[#allocation6 + $0x840] sm:$0xff]
    %v426 = vld [vmem:[#allocation6 + $0x848] sm:$0xff]
    %v427 = vld [vmem:[#allocation6 + $0x850] sm:$0xff]
    %v428 = vld [vmem:[#allocation6 + $0x858] sm:$0xff]
    %v429 = vld [vmem:[#allocation6 + $0x860] sm:$0xff]
    %v430 = vld [vmem:[#allocation6 + $0x868] sm:$0xff]
    %v431 = vld [vmem:[#allocation6 + $0x870] sm:$0xff]
    %v432 = vld [vmem:[#allocation6 + $0x878] sm:$0xff]
    %v433 = vld [vmem:[#allocation6 + $0x880] sm:$0xff]
    %v434 = vld [vmem:[#allocation6 + $0x888] sm:$0xff]
    %v435 = vld [vmem:[#allocation6 + $0x890] sm:$0xff]
    %v436 = vld [vmem:[#allocation6 + $0x898] sm:$0xff]
    %v437 = vld [vmem:[#allocation6 + $0x8a0] sm:$0xff]
    %v438 = vld [vmem:[#allocation6 + $0x8a8] sm:$0xff]
    %v439 = vld [vmem:[#allocation6 + $0x8b0] sm:$0xff]
    %v440 = vld [vmem:[#allocation6 + $0x8b8] sm:$0xff]
    %v441 = vld [vmem:[#allocation6 + $0x8c0] sm:$0xff]
    %v442 = vld [vmem:[#allocation6 + $0x8c8] sm:$0xff]
    %v443 = vld [vmem:[#allocation6 + $0x8d0] sm:$0xff]
    %v444 = vld [vmem:[#allocation6 + $0x8d8] sm:$0xff]
    %v445 = vld [vmem:[#allocation6 + $0x8e0] sm:$0xff]
    %v446 = vld [vmem:[#allocation6 + $0x8e8] sm:$0xff]
    %v447 = vld [vmem:[#allocation6 + $0x8f0] sm:$0xff]
    %v448 = vld [vmem:[#allocation6 + $0x8f8] sm:$0xff]
    %v449 = vld [vmem:[#allocation6 + $0x900] sm:$0xff]
    %v450 = vld [vmem:[#allocation6 + $0x908] sm:$0xff]
    %v451 = vld [vmem:[#allocation6 + $0x910] sm:$0xff]
    %v452 = vld [vmem:[#allocation6 + $0x918] sm:$0xff]
    %v453 = vld [vmem:[#allocation6 + $0x920] sm:$0xff]
    %v454 = vld [vmem:[#allocation6 + $0x928] sm:$0xff]
    %v455 = vld [vmem:[#allocation6 + $0x930] sm:$0xff]
    %v456 = vld [vmem:[#allocation6 + $0x938] sm:$0xff]
    %v457 = vld [vmem:[#allocation6 + $0x940] sm:$0xff]
    %v458 = vld [vmem:[#allocation6 + $0x948] sm:$0xff]
    %v459 = vld [vmem:[#allocation6 + $0x950] sm:$0xff]
    %v460 = vld [vmem:[#allocation6 + $0x958] sm:$0xff]
    %v461 = vld [vmem:[#allocation6 + $0x960] sm:$0xff]
    %v462 = vld [vmem:[#allocation6 + $0x968] sm:$0xff]
    %v463 = vld [vmem:[#allocation6 + $0x970] sm:$0xff]
    %v464 = vld [vmem:[#allocation6 + $0x978] sm:$0xff]
    %v465 = vld [vmem:[#allocation6 + $0x980] sm:$0xff]
    %v466 = vld [vmem:[#allocation6 + $0x988] sm:$0xff]
    %v467 = vld [vmem:[#allocation6 + $0x990] sm:$0xff]
    %v468 = vld [vmem:[#allocation6 + $0x998] sm:$0xff]
    %v469 = vld [vmem:[#allocation6 + $0x9a0] sm:$0xff]
    %v470 = vld [vmem:[#allocation6 + $0x9a8] sm:$0xff]
    %v471 = vld [vmem:[#allocation6 + $0x9b0] sm:$0xff]
    %v472 = vld [vmem:[#allocation6 + $0x9b8] sm:$0xff]
    %v473 = vld [vmem:[#allocation6 + $0x9c0] sm:$0xff]
    %v474 = vld [vmem:[#allocation6 + $0x9c8] sm:$0xff]
    %v475 = vld [vmem:[#allocation6 + $0x9d0] sm:$0xff]
    %v476 = vld [vmem:[#allocation6 + $0x9d8] sm:$0xff]
    %v477 = vld [vmem:[#allocation6 + $0x9e0] sm:$0xff]
    %v478 = vld [vmem:[#allocation6 + $0x9e8] sm:$0xff]
    %v479 = vld [vmem:[#allocation6 + $0x9f0] sm:$0xff]
    %v480 = vld [vmem:[#allocation6 + $0x9f8] sm:$0xff]
    %v481 = vld [vmem:[#allocation6 + $0xa00] sm:$0xff]
    %v482 = vld [vmem:[#allocation6 + $0xa08] sm:$0xff]
    %v483 = vld [vmem:[#allocation6 + $0xa10] sm:$0xff]
    %v484 = vld [vmem:[#allocation6 + $0xa18] sm:$0xff]
    %v485 = vld [vmem:[#allocation6 + $0xa20] sm:$0xff]
    %v486 = vld [vmem:[#allocation6 + $0xa28] sm:$0xff]
    %v487 = vld [vmem:[#allocation6 + $0xa30] sm:$0xff]
    %v488 = vld [vmem:[#allocation6 + $0xa38] sm:$0xff]
    %v489 = vld [vmem:[#allocation6 + $0xa40] sm:$0xff]
    %v490 = vld [vmem:[#allocation6 + $0xa48] sm:$0xff]
    %v491 = vld [vmem:[#allocation6 + $0xa50] sm:$0xff]
    %v492 = vld [vmem:[#allocation6 + $0xa58] sm:$0xff]
    %v493 = vld [vmem:[#allocation6 + $0xa60] sm:$0xff]
    %v494 = vld [vmem:[#allocation6 + $0xa68] sm:$0xff]
    %v495 = vld [vmem:[#allocation6 + $0xa70] sm:$0xff]
    %v496 = vld [vmem:[#allocation6 + $0xa78] sm:$0xff]
    %v497 = vld [vmem:[#allocation6 + $0xa80] sm:$0xff]
    %v498 = vld [vmem:[#allocation6 + $0xa88] sm:$0xff]
    %v499 = vld [vmem:[#allocation6 + $0xa90] sm:$0xff]
    %v500 = vld [vmem:[#allocation6 + $0xa98] sm:$0xff]
    %v501 = vld [vmem:[#allocation6 + $0xaa0] sm:$0xff]
    %v502 = vld [vmem:[#allocation6 + $0xaa8] sm:$0xff]
    %v503 = vld [vmem:[#allocation6 + $0xab0] sm:$0xff]
    %v504 = vld [vmem:[#allocation6 + $0xab8] sm:$0xff]
    %v505 = vld [vmem:[#allocation6 + $0xac0] sm:$0xff]
    %v506 = vld [vmem:[#allocation6 + $0xac8] sm:$0xff]
    %v507 = vld [vmem:[#allocation6 + $0xad0] sm:$0xff]
    %v508 = vld [vmem:[#allocation6 + $0xad8] sm:$0xff]
    %v509 = vld [vmem:[#allocation6 + $0xae0] sm:$0xff]
    %v510 = vld [vmem:[#allocation6 + $0xae8] sm:$0xff]
    %v511 = vld [vmem:[#allocation6 + $0xaf0] sm:$0xff]
    %v512 = vld [vmem:[#allocation6 + $0xaf8] sm:$0xff]
    %v513 = vld [vmem:[#allocation6 + $0xb00] sm:$0xff]
    %v514 = vld [vmem:[#allocation6 + $0xb08] sm:$0xff]
    %v515 = vld [vmem:[#allocation6 + $0xb10] sm:$0xff]
    %v516 = vld [vmem:[#allocation6 + $0xb18] sm:$0xff]
    %v517 = vld [vmem:[#allocation6 + $0xb20] sm:$0xff]
    %v518 = vld [vmem:[#allocation6 + $0xb28] sm:$0xff]
    %v519 = vld [vmem:[#allocation6 + $0xb30] sm:$0xff]
    %v520 = vld [vmem:[#allocation6 + $0xb38] sm:$0xff]
    %v521 = vld [vmem:[#allocation6 + $0xb40] sm:$0xff]
    %v522 = vld [vmem:[#allocation6 + $0xb48] sm:$0xff]
    %v523 = vld [vmem:[#allocation6 + $0xb50] sm:$0xff]
    %v524 = vld [vmem:[#allocation6 + $0xb58] sm:$0xff]
    %v525 = vld [vmem:[#allocation6 + $0xb60] sm:$0xff]
    %v526 = vld [vmem:[#allocation6 + $0xb68] sm:$0xff]
    %v527 = vld [vmem:[#allocation6 + $0xb70] sm:$0xff]
    %v528 = vld [vmem:[#allocation6 + $0xb78] sm:$0xff]
    %v529 = vld [vmem:[#allocation6 + $0xb80] sm:$0xff]
    %v530 = vld [vmem:[#allocation6 + $0xb88] sm:$0xff]
    %v531 = vld [vmem:[#allocation6 + $0xb90] sm:$0xff]
    %v532 = vld [vmem:[#allocation6 + $0xb98] sm:$0xff]
    %v533 = vld [vmem:[#allocation6 + $0xba0] sm:$0xff]
    %v534 = vld [vmem:[#allocation6 + $0xba8] sm:$0xff]
    %v535 = vld [vmem:[#allocation6 + $0xbb0] sm:$0xff]
    %v536 = vld [vmem:[#allocation6 + $0xbb8] sm:$0xff]
    %v537 = vld [vmem:[#allocation6 + $0xbc0] sm:$0xff]
    %v538 = vld [vmem:[#allocation6 + $0xbc8] sm:$0xff]
    %v539 = vld [vmem:[#allocation6 + $0xbd0] sm:$0xff]
    %v540 = vld [vmem:[#allocation6 + $0xbd8] sm:$0xff]
    %v541 = vld [vmem:[#allocation6 + $0xbe0] sm:$0xff]
    %v542 = vld [vmem:[#allocation6 + $0xbe8] sm:$0xff]
    %v543 = vld [vmem:[#allocation6 + $0xbf0] sm:$0xff]
    %v544 = vld [vmem:[#allocation6 + $0xbf8] sm:$0xff]
    %v545 = vld [vmem:[#allocation6 + $0xc00] sm:$0xff]
    %v546 = vld [vmem:[#allocation6 + $0xc08] sm:$0xff]
    %v547 = vld [vmem:[#allocation6 + $0xc10] sm:$0xff]
    %v548 = vld [vmem:[#allocation6 + $0xc18] sm:$0xff]
    %v549 = vld [vmem:[#allocation6 + $0xc20] sm:$0xff]
    %v550 = vld [vmem:[#allocation6 + $0xc28] sm:$0xff]
    %v551 = vld [vmem:[#allocation6 + $0xc30] sm:$0xff]
    %v552 = vld [vmem:[#allocation6 + $0xc38] sm:$0xff]
    %v553 = vld [vmem:[#allocation6 + $0xc40] sm:$0xff]
    %v554 = vld [vmem:[#allocation6 + $0xc48] sm:$0xff]
    %v555 = vld [vmem:[#allocation6 + $0xc50] sm:$0xff]
    %v556 = vld [vmem:[#allocation6 + $0xc58] sm:$0xff]
    %v557 = vld [vmem:[#allocation6 + $0xc60] sm:$0xff]
    %v558 = vld [vmem:[#allocation6 + $0xc68] sm:$0xff]
    %v559 = vld [vmem:[#allocation6 + $0xc70] sm:$0xff]
    %v560 = vld [vmem:[#allocation6 + $0xc78] sm:$0xff]
    %v561 = vld [vmem:[#allocation6 + $0xc80] sm:$0xff]
    %v562 = vld [vmem:[#allocation6 + $0xc88] sm:$0xff]
    %v563 = vld [vmem:[#allocation6 + $0xc90] sm:$0xff]
    %v564 = vld [vmem:[#allocation6 + $0xc98] sm:$0xff]
    %v565 = vld [vmem:[#allocation6 + $0xca0] sm:$0xff]
    %v566 = vld [vmem:[#allocation6 + $0xca8] sm:$0xff]
    %v567 = vld [vmem:[#allocation6 + $0xcb0] sm:$0xff]
    %v568 = vld [vmem:[#allocation6 + $0xcb8] sm:$0xff]
    %v569 = vld [vmem:[#allocation6 + $0xcc0] sm:$0xff]
    %v570 = vld [vmem:[#allocation6 + $0xcc8] sm:$0xff]
    %v571 = vld [vmem:[#allocation6 + $0xcd0] sm:$0xff]
    %v572 = vld [vmem:[#allocation6 + $0xcd8] sm:$0xff]
    %v573 = vld [vmem:[#allocation6 + $0xce0] sm:$0xff]
    %v574 = vld [vmem:[#allocation6 + $0xce8] sm:$0xff]
    %v575 = vld [vmem:[#allocation6 + $0xcf0] sm:$0xff]
    %v576 = vld [vmem:[#allocation6 + $0xcf8] sm:$0xff]
    %v577 = vld [vmem:[#allocation6 + $0xd00] sm:$0xff]
    %v578 = vld [vmem:[#allocation6 + $0xd08] sm:$0xff]
    %v579 = vld [vmem:[#allocation6 + $0xd10] sm:$0xff]
    %v580 = vld [vmem:[#allocation6 + $0xd18] sm:$0xff]
    %v581 = vld [vmem:[#allocation6 + $0xd20] sm:$0xff]
    %v582 = vld [vmem:[#allocation6 + $0xd28] sm:$0xff]
    %v583 = vld [vmem:[#allocation6 + $0xd30] sm:$0xff]
    %v584 = vld [vmem:[#allocation6 + $0xd38] sm:$0xff]
    %v585 = vld [vmem:[#allocation6 + $0xd40] sm:$0xff]
    %v586 = vld [vmem:[#allocation6 + $0xd48] sm:$0xff]
    %v587 = vld [vmem:[#allocation6 + $0xd50] sm:$0xff]
    %v588 = vld [vmem:[#allocation6 + $0xd58] sm:$0xff]
    %v589 = vld [vmem:[#allocation6 + $0xd60] sm:$0xff]
    %v590 = vld [vmem:[#allocation6 + $0xd68] sm:$0xff]
    %v591 = vld [vmem:[#allocation6 + $0xd70] sm:$0xff]
    %v592 = vld [vmem:[#allocation6 + $0xd78] sm:$0xff]
    %v593 = vld [vmem:[#allocation6 + $0xd80] sm:$0xff]
    %v594 = vld [vmem:[#allocation6 + $0xd88] sm:$0xff]
    %v595 = vld [vmem:[#allocation6 + $0xd90] sm:$0xff]
    %v596 = vld [vmem:[#allocation6 + $0xd98] sm:$0xff]
    %v597 = vld [vmem:[#allocation6 + $0xda0] sm:$0xff]
    %v598 = vld [vmem:[#allocation6 + $0xda8] sm:$0xff]
    %v599 = vld [vmem:[#allocation6 + $0xdb0] sm:$0xff]
    %v600 = vld [vmem:[#allocation6 + $0xdb8] sm:$0xff]
    %v601 = vld [vmem:[#allocation6 + $0xdc0] sm:$0xff]
    %v602 = vld [vmem:[#allocation6 + $0xdc8] sm:$0xff]
    %v603 = vld [vmem:[#allocation6 + $0xdd0] sm:$0xff]
    %v604 = vld [vmem:[#allocation6 + $0xdd8] sm:$0xff]
    %v605 = vld [vmem:[#allocation6 + $0xde0] sm:$0xff]
    %v606 = vld [vmem:[#allocation6 + $0xde8] sm:$0xff]
    %v607 = vld [vmem:[#allocation6 + $0xdf0] sm:$0xff]
    %v608 = vld [vmem:[#allocation6 + $0xdf8] sm:$0xff]
    %v609 = vld [vmem:[#allocation6 + $0xe00] sm:$0xff]
    %v610 = vld [vmem:[#allocation6 + $0xe08] sm:$0xff]
    %v611 = vld [vmem:[#allocation6 + $0xe10] sm:$0xff]
    %v612 = vld [vmem:[#allocation6 + $0xe18] sm:$0xff]
    %v613 = vld [vmem:[#allocation6 + $0xe20] sm:$0xff]
    %v614 = vld [vmem:[#allocation6 + $0xe28] sm:$0xff]
    %v615 = vld [vmem:[#allocation6 + $0xe30] sm:$0xff]
    %v616 = vld [vmem:[#allocation6 + $0xe38] sm:$0xff]
    %v617 = vld [vmem:[#allocation6 + $0xe40] sm:$0xff]
    %v618 = vld [vmem:[#allocation6 + $0xe48] sm:$0xff]
    %v619 = vld [vmem:[#allocation6 + $0xe50] sm:$0xff]
    %v620 = vld [vmem:[#allocation6 + $0xe58] sm:$0xff]
    %v621 = vld [vmem:[#allocation6 + $0xe60] sm:$0xff]
    %v622 = vld [vmem:[#allocation6 + $0xe68] sm:$0xff]
    %v623 = vld [vmem:[#allocation6 + $0xe70] sm:$0xff]
    %v624 = vld [vmem:[#allocation6 + $0xe78] sm:$0xff]
    %v625 = vld [vmem:[#allocation6 + $0xe80] sm:$0xff]
    %v626 = vld [vmem:[#allocation6 + $0xe88] sm:$0xff]
    %v627 = vld [vmem:[#allocation6 + $0xe90] sm:$0xff]
    %v628 = vld [vmem:[#allocation6 + $0xe98] sm:$0xff]
    %v629 = vld [vmem:[#allocation6 + $0xea0] sm:$0xff]
    %v630 = vld [vmem:[#allocation6 + $0xea8] sm:$0xff]
    %v631 = vld [vmem:[#allocation6 + $0xeb0] sm:$0xff]
    %v632 = vld [vmem:[#allocation6 + $0xeb8] sm:$0xff]
    %v633 = vld [vmem:[#allocation6 + $0xec0] sm:$0xff]
    %v634 = vld [vmem:[#allocation6 + $0xec8] sm:$0xff]
    %v635 = vld [vmem:[#allocation6 + $0xed0] sm:$0xff]
    %v636 = vld [vmem:[#allocation6 + $0xed8] sm:$0xff]
    %v637 = vld [vmem:[#allocation6 + $0xee0] sm:$0xff]
    %v638 = vld [vmem:[#allocation6 + $0xee8] sm:$0xff]
    %v639 = vld [vmem:[#allocation6 + $0xef0] sm:$0xff]
    %v640 = vld [vmem:[#allocation6 + $0xef8] sm:$0xff]
    %v641 = vld [vmem:[#allocation6 + $0xf00] sm:$0xff]
    %v642 = vld [vmem:[#allocation6 + $0xf08] sm:$0xff]
    %v643 = vld [vmem:[#allocation6 + $0xf10] sm:$0xff]
    %v644 = vld [vmem:[#allocation6 + $0xf18] sm:$0xff]
    %v645 = vld [vmem:[#allocation6 + $0xf20] sm:$0xff]
    %v646 = vld [vmem:[#allocation6 + $0xf28] sm:$0xff]
    %v647 = vld [vmem:[#allocation6 + $0xf30] sm:$0xff]
    %v648 = vld [vmem:[#allocation6 + $0xf38] sm:$0xff]
    %v649 = vld [vmem:[#allocation6 + $0xf40] sm:$0xff]
    %v650 = vld [vmem:[#allocation6 + $0xf48] sm:$0xff]
    %v651 = vld [vmem:[#allocation6 + $0xf50] sm:$0xff]
    %v652 = vld [vmem:[#allocation6 + $0xf58] sm:$0xff]
    %v653 = vld [vmem:[#allocation6 + $0xf60] sm:$0xff]
    %v654 = vld [vmem:[#allocation6 + $0xf68] sm:$0xff]
    %v655 = vld [vmem:[#allocation6 + $0xf70] sm:$0xff]
    %v656 = vld [vmem:[#allocation6 + $0xf78] sm:$0xff]
    %v657 = vld [vmem:[#allocation6 + $0xf80] sm:$0xff]
    %v658 = vld [vmem:[#allocation6 + $0xf88] sm:$0xff]
    %v659 = vld [vmem:[#allocation6 + $0xf90] sm:$0xff]
    %v660 = vld [vmem:[#allocation6 + $0xf98] sm:$0xff]
    %v661 = vld [vmem:[#allocation6 + $0xfa0] sm:$0xff]
    %v662 = vld [vmem:[#allocation6 + $0xfa8] sm:$0xff]
    %v663 = vld [vmem:[#allocation6 + $0xfb0] sm:$0xff]
    %v664 = vld [vmem:[#allocation6 + $0xfb8] sm:$0xff]
    %v665 = vld [vmem:[#allocation6 + $0xfc0] sm:$0xff]
    %v666 = vld [vmem:[#allocation6 + $0xfc8] sm:$0xff]
    %v667 = vld [vmem:[#allocation6 + $0xfd0] sm:$0xff]
    %v668 = vld [vmem:[#allocation6 + $0xfd8] sm:$0xff]
    %v669 = vld [vmem:[#allocation6 + $0xfe0] sm:$0xff]
    %v670 = vld [vmem:[#allocation6 + $0xfe8] sm:$0xff]
    %v671 = vld [vmem:[#allocation6 + $0xff0] sm:$0xff]
    %v672 = vld [vmem:[#allocation6 + $0xff8] sm:$0xff]
    %v673 = vld [vmem:[#allocation6 + $0x1000] sm:$0xff]
    %v674 = vld [vmem:[#allocation6 + $0x1008] sm:$0xff]
    %v675 = vld [vmem:[#allocation6 + $0x1010] sm:$0xff]
    %v676 = vld [vmem:[#allocation6 + $0x1018] sm:$0xff]
    %v677 = vld [vmem:[#allocation6 + $0x1020] sm:$0xff]
    %v678 = vld [vmem:[#allocation6 + $0x1028] sm:$0xff]
    %v679 = vld [vmem:[#allocation6 + $0x1030] sm:$0xff]
    %v680 = vld [vmem:[#allocation6 + $0x1038] sm:$0xff]
    %v681 = vld [vmem:[#allocation6 + $0x1040] sm:$0xff]
    %v682 = vld [vmem:[#allocation6 + $0x1048] sm:$0xff]
    %v683 = vld [vmem:[#allocation6 + $0x1050] sm:$0xff]
    %v684 = vld [vmem:[#allocation6 + $0x1058] sm:$0xff]
    %v685 = vld [vmem:[#allocation6 + $0x1060] sm:$0xff]
    %v686 = vld [vmem:[#allocation6 + $0x1068] sm:$0xff]
    %v687 = vld [vmem:[#allocation6 + $0x1070] sm:$0xff]
    %v688 = vld [vmem:[#allocation6 + $0x1078] sm:$0xff]
    %v689 = vld [vmem:[#allocation6 + $0x1080] sm:$0xff]
    %v690 = vld [vmem:[#allocation6 + $0x1088] sm:$0xff]
    %v691 = vld [vmem:[#allocation6 + $0x1090] sm:$0xff]
    %v692 = vld [vmem:[#allocation6 + $0x1098] sm:$0xff]
    %v693 = vld [vmem:[#allocation6 + $0x10a0] sm:$0xff]
    %v694 = vld [vmem:[#allocation6 + $0x10a8] sm:$0xff]
    %v695 = vld [vmem:[#allocation6 + $0x10b0] sm:$0xff]
    %v696 = vld [vmem:[#allocation6 + $0x10b8] sm:$0xff]
    %v697 = vld [vmem:[#allocation6 + $0x10c0] sm:$0xff]
    %v698 = vld [vmem:[#allocation6 + $0x10c8] sm:$0xff]
    %v699 = vld [vmem:[#allocation6 + $0x10d0] sm:$0xff]
    %v700 = vld [vmem:[#allocation6 + $0x10d8] sm:$0xff]
    %v701 = vld [vmem:[#allocation6 + $0x10e0] sm:$0xff]
    %v702 = vld [vmem:[#allocation6 + $0x10e8] sm:$0xff]
    %v703 = vld [vmem:[#allocation6 + $0x10f0] sm:$0xff]
    %v704 = vld [vmem:[#allocation6 + $0x10f8] sm:$0xff]
    %v705 = vld [vmem:[#allocation6 + $0x1100] sm:$0xff]
    %v706 = vld [vmem:[#allocation6 + $0x1108] sm:$0xff]
    %v707 = vld [vmem:[#allocation6 + $0x1110] sm:$0xff]
    %v708 = vld [vmem:[#allocation6 + $0x1118] sm:$0xff]
    %v709 = vld [vmem:[#allocation6 + $0x1120] sm:$0xff]
    %v710 = vld [vmem:[#allocation6 + $0x1128] sm:$0xff]
    %v711 = vld [vmem:[#allocation6 + $0x1130] sm:$0xff]
    %v712 = vld [vmem:[#allocation6 + $0x1138] sm:$0xff]
    %v713 = vld [vmem:[#allocation6 + $0x1140] sm:$0xff]
    %v714 = vld [vmem:[#allocation6 + $0x1148] sm:$0xff]
    %v715 = vld [vmem:[#allocation6 + $0x1150] sm:$0xff]
    %v716 = vld [vmem:[#allocation6 + $0x1158] sm:$0xff]
    %v717 = vld [vmem:[#allocation6 + $0x1160] sm:$0xff]
    %v718 = vld [vmem:[#allocation6 + $0x1168] sm:$0xff]
    %v719 = vld [vmem:[#allocation6 + $0x1170] sm:$0xff]
    %v720 = vld [vmem:[#allocation6 + $0x1178] sm:$0xff]
    %v721 = vld [vmem:[#allocation6 + $0x1180] sm:$0xff]
    %v722 = vld [vmem:[#allocation6 + $0x1188] sm:$0xff]
    %v723 = vld [vmem:[#allocation6 + $0x1190] sm:$0xff]
    %v724 = vld [vmem:[#allocation6 + $0x1198] sm:$0xff]
    %v725 = vld [vmem:[#allocation6 + $0x11a0] sm:$0xff]
    %v726 = vld [vmem:[#allocation6 + $0x11a8] sm:$0xff]
    %v727 = vld [vmem:[#allocation6 + $0x11b0] sm:$0xff]
    %v728 = vld [vmem:[#allocation6 + $0x11b8] sm:$0xff]
    %v729 = vld [vmem:[#allocation6 + $0x11c0] sm:$0xff]
    %v730 = vld [vmem:[#allocation6 + $0x11c8] sm:$0xff]
    %v731 = vld [vmem:[#allocation6 + $0x11d0] sm:$0xff]
    %v732 = vld [vmem:[#allocation6 + $0x11d8] sm:$0xff]
    %v733 = vld [vmem:[#allocation6 + $0x11e0] sm:$0xff]
    %v734 = vld [vmem:[#allocation6 + $0x11e8] sm:$0xff]
    %v735 = vld [vmem:[#allocation6 + $0x11f0] sm:$0xff]
    %v736 = vld [vmem:[#allocation6 + $0x11f8] sm:$0xff]
    %v737 = vld [vmem:[#allocation6 + $0x1200] sm:$0xff]
    %v738 = vld [vmem:[#allocation6 + $0x1208] sm:$0xff]
    %v739 = vld [vmem:[#allocation6 + $0x1210] sm:$0xff]
    %v740 = vld [vmem:[#allocation6 + $0x1218] sm:$0xff]
    %v741 = vld [vmem:[#allocation6 + $0x1220] sm:$0xff]
    %v742 = vld [vmem:[#allocation6 + $0x1228] sm:$0xff]
    %v743 = vld [vmem:[#allocation6 + $0x1230] sm:$0xff]
    %v744 = vld [vmem:[#allocation6 + $0x1238] sm:$0xff]
    %v745 = vld [vmem:[#allocation6 + $0x1240] sm:$0xff]
    %v746 = vld [vmem:[#allocation6 + $0x1248] sm:$0xff]
    %v747 = vld [vmem:[#allocation6 + $0x1250] sm:$0xff]
    %v748 = vld [vmem:[#allocation6 + $0x1258] sm:$0xff]
    %v749 = vld [vmem:[#allocation6 + $0x1260] sm:$0xff]
    %v750 = vld [vmem:[#allocation6 + $0x1268] sm:$0xff]
    %v751 = vld [vmem:[#allocation6 + $0x1270] sm:$0xff]
    %v752 = vld [vmem:[#allocation6 + $0x1278] sm:$0xff]
    %v753 = vld [vmem:[#allocation6 + $0x1280] sm:$0xff]
    %v754 = vld [vmem:[#allocation6 + $0x1288] sm:$0xff]
    %v755 = vld [vmem:[#allocation6 + $0x1290] sm:$0xff]
    %v756 = vld [vmem:[#allocation6 + $0x1298] sm:$0xff]
    %v757 = vld [vmem:[#allocation6 + $0x12a0] sm:$0xff]
    %v758 = vld [vmem:[#allocation6 + $0x12a8] sm:$0xff]
    %v759 = vld [vmem:[#allocation6 + $0x12b0] sm:$0xff]
    %v760 = vld [vmem:[#allocation6 + $0x12b8] sm:$0xff]
    %v761 = vld [vmem:[#allocation6 + $0x12c0] sm:$0xff]
    %v762 = vld [vmem:[#allocation6 + $0x12c8] sm:$0xff]
    %v763 = vld [vmem:[#allocation6 + $0x12d0] sm:$0xff]
    %v764 = vld [vmem:[#allocation6 + $0x12d8] sm:$0xff]
    %v765 = vld [vmem:[#allocation6 + $0x12e0] sm:$0xff]
    %v766 = vld [vmem:[#allocation6 + $0x12e8] sm:$0xff]
    %v767 = vld [vmem:[#allocation6 + $0x12f0] sm:$0xff]
    %v768 = vld [vmem:[#allocation6 + $0x12f8] sm:$0xff]
    %v769 = vld [vmem:[#allocation6 + $0x1300] sm:$0xff]
    %v770 = vld [vmem:[#allocation6 + $0x1308] sm:$0xff]
    %v771 = vld [vmem:[#allocation6 + $0x1310] sm:$0xff]
    %v772 = vld [vmem:[#allocation6 + $0x1318] sm:$0xff]
    %v773 = vld [vmem:[#allocation6 + $0x1320] sm:$0xff]
    %v774 = vld [vmem:[#allocation6 + $0x1328] sm:$0xff]
    %v775 = vld [vmem:[#allocation6 + $0x1330] sm:$0xff]
    %v776 = vld [vmem:[#allocation6 + $0x1338] sm:$0xff]
    %v777 = vld [vmem:[#allocation6 + $0x1340] sm:$0xff]
    %v778 = vld [vmem:[#allocation6 + $0x1348] sm:$0xff]
    %v779 = vld [vmem:[#allocation6 + $0x1350] sm:$0xff]
    %v780 = vld [vmem:[#allocation6 + $0x1358] sm:$0xff]
    %v781 = vld [vmem:[#allocation6 + $0x1360] sm:$0xff]
    %v782 = vld [vmem:[#allocation6 + $0x1368] sm:$0xff]
    %v783 = vld [vmem:[#allocation6 + $0x1370] sm:$0xff]
    %v784 = vld [vmem:[#allocation6 + $0x1378] sm:$0xff]
    %v785 = vld [vmem:[#allocation6 + $0x1380] sm:$0xff]
    %v786 = vld [vmem:[#allocation6 + $0x1388] sm:$0xff]
    %v787 = vld [vmem:[#allocation6 + $0x1390] sm:$0xff]
    %v788 = vld [vmem:[#allocation6 + $0x1398] sm:$0xff]
    %v789 = vld [vmem:[#allocation6 + $0x13a0] sm:$0xff]
    %v790 = vld [vmem:[#allocation6 + $0x13a8] sm:$0xff]
    %v791 = vld [vmem:[#allocation6 + $0x13b0] sm:$0xff]
    %v792 = vld [vmem:[#allocation6 + $0x13b8] sm:$0xff]
    %v793 = vld [vmem:[#allocation6 + $0x13c0] sm:$0xff]
    %v794 = vld [vmem:[#allocation6 + $0x13c8] sm:$0xff]
    %v795 = vld [vmem:[#allocation6 + $0x13d0] sm:$0xff]
    %v796 = vld [vmem:[#allocation6 + $0x13d8] sm:$0xff]
    %v797 = vld [vmem:[#allocation6 + $0x13e0] sm:$0xff]
    %v798 = vld [vmem:[#allocation6 + $0x13e8] sm:$0xff]
    %v799 = vld [vmem:[#allocation6 + $0x13f0] sm:$0xff]
    %v800 = vld [vmem:[#allocation6 + $0x13f8] sm:$0xff]
    %v801 = vld [vmem:[#allocation6 + $0x1400] sm:$0xff]
    %v802 = vld [vmem:[#allocation6 + $0x1408] sm:$0xff]
    %v803 = vld [vmem:[#allocation6 + $0x1410] sm:$0xff]
    %v804 = vld [vmem:[#allocation6 + $0x1418] sm:$0xff]
    %v805 = vld [vmem:[#allocation6 + $0x1420] sm:$0xff]
    %v806 = vld [vmem:[#allocation6 + $0x1428] sm:$0xff]
    %v807 = vld [vmem:[#allocation6 + $0x1430] sm:$0xff]
    %v808 = vld [vmem:[#allocation6 + $0x1438] sm:$0xff]
    %v809 = vld [vmem:[#allocation6 + $0x1440] sm:$0xff]
    %v810 = vld [vmem:[#allocation6 + $0x1448] sm:$0xff]
    %v811 = vld [vmem:[#allocation6 + $0x1450] sm:$0xff]
    %v812 = vld [vmem:[#allocation6 + $0x1458] sm:$0xff]
    %v813 = vld [vmem:[#allocation6 + $0x1460] sm:$0xff]
    %v814 = vld [vmem:[#allocation6 + $0x1468] sm:$0xff]
    %v815 = vld [vmem:[#allocation6 + $0x1470] sm:$0xff]
    %v816 = vld [vmem:[#allocation6 + $0x1478] sm:$0xff]
    %v817 = vld [vmem:[#allocation6 + $0x1480] sm:$0xff]
    %v818 = vld [vmem:[#allocation6 + $0x1488] sm:$0xff]
    %v819 = vld [vmem:[#allocation6 + $0x1490] sm:$0xff]
    %v820 = vld [vmem:[#allocation6 + $0x1498] sm:$0xff]
    %v821 = vld [vmem:[#allocation6 + $0x14a0] sm:$0xff]
    %v822 = vld [vmem:[#allocation6 + $0x14a8] sm:$0xff]
    %v823 = vld [vmem:[#allocation6 + $0x14b0] sm:$0xff]
    %v824 = vld [vmem:[#allocation6 + $0x14b8] sm:$0xff]
    %v825 = vld [vmem:[#allocation6 + $0x14c0] sm:$0xff]
    %v826 = vld [vmem:[#allocation6 + $0x14c8] sm:$0xff]
    %v827 = vld [vmem:[#allocation6 + $0x14d0] sm:$0xff]
    %v828 = vld [vmem:[#allocation6 + $0x14d8] sm:$0xff]
    %v829 = vld [vmem:[#allocation6 + $0x14e0] sm:$0xff]
    %v830 = vld [vmem:[#allocation6 + $0x14e8] sm:$0xff]
    %v831 = vld [vmem:[#allocation6 + $0x14f0] sm:$0xff]
    %v832 = vld [vmem:[#allocation6 + $0x14f8] sm:$0xff]
    %v833 = vld [vmem:[#allocation6 + $0x1500] sm:$0xff]
    %v834 = vld [vmem:[#allocation6 + $0x1508] sm:$0xff]
    %v835 = vld [vmem:[#allocation6 + $0x1510] sm:$0xff]
    %v836 = vld [vmem:[#allocation6 + $0x1518] sm:$0xff]
    %v837 = vld [vmem:[#allocation6 + $0x1520] sm:$0xff]
    %v838 = vld [vmem:[#allocation6 + $0x1528] sm:$0xff]
    %v839 = vld [vmem:[#allocation6 + $0x1530] sm:$0xff]
    %v840 = vld [vmem:[#allocation6 + $0x1538] sm:$0xff]
    %v841 = vld [vmem:[#allocation6 + $0x1540] sm:$0xff]
    %v842 = vld [vmem:[#allocation6 + $0x1548] sm:$0xff]
    %v843 = vld [vmem:[#allocation6 + $0x1550] sm:$0xff]
    %v844 = vld [vmem:[#allocation6 + $0x1558] sm:$0xff]
    %v845 = vld [vmem:[#allocation6 + $0x1560] sm:$0xff]
    %v846 = vld [vmem:[#allocation6 + $0x1568] sm:$0xff]
    %v847 = vld [vmem:[#allocation6 + $0x1570] sm:$0xff]
    %v848 = vld [vmem:[#allocation6 + $0x1578] sm:$0xff]
    %v849 = vld [vmem:[#allocation6 + $0x1580] sm:$0xff]
    %v850 = vld [vmem:[#allocation6 + $0x1588] sm:$0xff]
    %v851 = vld [vmem:[#allocation6 + $0x1590] sm:$0xff]
    %v852 = vld [vmem:[#allocation6 + $0x1598] sm:$0xff]
    %v853 = vld [vmem:[#allocation6 + $0x15a0] sm:$0xff]
    %v854 = vld [vmem:[#allocation6 + $0x15a8] sm:$0xff]
    %v855 = vld [vmem:[#allocation6 + $0x15b0] sm:$0xff]
    %v856 = vld [vmem:[#allocation6 + $0x15b8] sm:$0xff]
    %v857 = vld [vmem:[#allocation6 + $0x15c0] sm:$0xff]
    %v858 = vld [vmem:[#allocation6 + $0x15c8] sm:$0xff]
    %v859 = vld [vmem:[#allocation6 + $0x15d0] sm:$0xff]
    %v860 = vld [vmem:[#allocation6 + $0x15d8] sm:$0xff]
    %v861 = vld [vmem:[#allocation6 + $0x15e0] sm:$0xff]
    %v862 = vld [vmem:[#allocation6 + $0x15e8] sm:$0xff]
    %v863 = vld [vmem:[#allocation6 + $0x15f0] sm:$0xff]
    %v864 = vld [vmem:[#allocation6 + $0x15f8] sm:$0xff]
    %v865 = vld [vmem:[#allocation6 + $0x1600] sm:$0xff]
    %v866 = vld [vmem:[#allocation6 + $0x1608] sm:$0xff]
    %v867 = vld [vmem:[#allocation6 + $0x1610] sm:$0xff]
    %v868 = vld [vmem:[#allocation6 + $0x1618] sm:$0xff]
    %v869 = vld [vmem:[#allocation6 + $0x1620] sm:$0xff]
    %v870 = vld [vmem:[#allocation6 + $0x1628] sm:$0xff]
    %v871 = vld [vmem:[#allocation6 + $0x1630] sm:$0xff]
    %v872 = vld [vmem:[#allocation6 + $0x1638] sm:$0xff]
    %v873 = vld [vmem:[#allocation6 + $0x1640] sm:$0xff]
    %v874 = vld [vmem:[#allocation6 + $0x1648] sm:$0xff]
    %v875 = vld [vmem:[#allocation6 + $0x1650] sm:$0xff]
    %v876 = vld [vmem:[#allocation6 + $0x1658] sm:$0xff]
    %v877 = vld [vmem:[#allocation6 + $0x1660] sm:$0xff]
    %v878 = vld [vmem:[#allocation6 + $0x1668] sm:$0xff]
    %v879 = vld [vmem:[#allocation6 + $0x1670] sm:$0xff]
    %v880 = vld [vmem:[#allocation6 + $0x1678] sm:$0xff]
    %v881 = vld [vmem:[#allocation6 + $0x1680] sm:$0xff]
    %v882 = vld [vmem:[#allocation6 + $0x1688] sm:$0xff]
    %v883 = vld [vmem:[#allocation6 + $0x1690] sm:$0xff]
    %v884 = vld [vmem:[#allocation6 + $0x1698] sm:$0xff]
    %v885 = vld [vmem:[#allocation6 + $0x16a0] sm:$0xff]
    %v886 = vld [vmem:[#allocation6 + $0x16a8] sm:$0xff]
    %v887 = vld [vmem:[#allocation6 + $0x16b0] sm:$0xff]
    %v888 = vld [vmem:[#allocation6 + $0x16b8] sm:$0xff]
    %v889 = vld [vmem:[#allocation6 + $0x16c0] sm:$0xff]
    %v890 = vld [vmem:[#allocation6 + $0x16c8] sm:$0xff]
    %v891 = vld [vmem:[#allocation6 + $0x16d0] sm:$0xff]
    %v892 = vld [vmem:[#allocation6 + $0x16d8] sm:$0xff]
    %v893 = vld [vmem:[#allocation6 + $0x16e0] sm:$0xff]
    %v894 = vld [vmem:[#allocation6 + $0x16e8] sm:$0xff]
    %v895 = vld [vmem:[#allocation6 + $0x16f0] sm:$0xff]
    %v896 = vld [vmem:[#allocation6 + $0x16f8] sm:$0xff]
    %v897 = vld [vmem:[#allocation6 + $0x1700] sm:$0xff]
    %v898 = vld [vmem:[#allocation6 + $0x1708] sm:$0xff]
    %v899 = vld [vmem:[#allocation6 + $0x1710] sm:$0xff]
    %v900 = vld [vmem:[#allocation6 + $0x1718] sm:$0xff]
    %v901 = vld [vmem:[#allocation6 + $0x1720] sm:$0xff]
    %v902 = vld [vmem:[#allocation6 + $0x1728] sm:$0xff]
    %v903 = vld [vmem:[#allocation6 + $0x1730] sm:$0xff]
    %v904 = vld [vmem:[#allocation6 + $0x1738] sm:$0xff]
    %v905 = vld [vmem:[#allocation6 + $0x1740] sm:$0xff]
    %v906 = vld [vmem:[#allocation6 + $0x1748] sm:$0xff]
    %v907 = vld [vmem:[#allocation6 + $0x1750] sm:$0xff]
    %v908 = vld [vmem:[#allocation6 + $0x1758] sm:$0xff]
    %v909 = vld [vmem:[#allocation6 + $0x1760] sm:$0xff]
    %v910 = vld [vmem:[#allocation6 + $0x1768] sm:$0xff]
    %v911 = vld [vmem:[#allocation6 + $0x1770] sm:$0xff]
    %v912 = vld [vmem:[#allocation6 + $0x1778] sm:$0xff]
    %v913 = vld [vmem:[#allocation6 + $0x1780] sm:$0xff]
    %v914 = vld [vmem:[#allocation6 + $0x1788] sm:$0xff]
    %v915 = vld [vmem:[#allocation6 + $0x1790] sm:$0xff]
    %v916 = vld [vmem:[#allocation6 + $0x1798] sm:$0xff]
    %v917 = vld [vmem:[#allocation6 + $0x17a0] sm:$0xff]
    %v918 = vld [vmem:[#allocation6 + $0x17a8] sm:$0xff]
    %v919 = vld [vmem:[#allocation6 + $0x17b0] sm:$0xff]
    %v920 = vld [vmem:[#allocation6 + $0x17b8] sm:$0xff]
    %v921 = vld [vmem:[#allocation6 + $0x17c0] sm:$0xff]
    %v922 = vld [vmem:[#allocation6 + $0x17c8] sm:$0xff]
    %v923 = vld [vmem:[#allocation6 + $0x17d0] sm:$0xff]
    %v924 = vld [vmem:[#allocation6 + $0x17d8] sm:$0xff]
    %v925 = vld [vmem:[#allocation6 + $0x17e0] sm:$0xff]
    %v926 = vld [vmem:[#allocation6 + $0x17e8] sm:$0xff]
    %v927 = vld [vmem:[#allocation6 + $0x17f0] sm:$0xff]
    %v928 = vld [vmem:[#allocation6 + $0x17f8] sm:$0xff]
    %v929 = vld [vmem:[#allocation7] sm:$0xff]
    %v931 = vperm.slane %v929, 0
    %v932 = vperm.slane %v929, 1
    %v933 = vperm.slane %v929, 2
    %v934 = vperm.slane %v929, 3
    %v935 = vperm.slane %v929, 4
    %v936 = vperm.slane %v929, 5
    %v937 = vperm.slane %v929, 6
    %v938 = vperm.slane %v929, 7
    %949 = vst [vmem:[#allocation1] ss:$4 sm:$0xff] %v159
    %s950 = scalar_lea.vmem [#allocation1], 32
    %951 = vst [vmem:[%s950] ss:$4 sm:$0xff] %v160
    %v952 = vld.sshfl [vmem:[#allocation1] sm:$0xff pattern:$0x73625140]
    %v953 = vld.sshfl [vmem:[#allocation1 + $0x8] sm:$0xff pattern:$0x73625140]
    %v954 = vld.sshfl [vmem:[#allocation1 + $0x10] sm:$0xff pattern:$0x73625140]
    %v955 = vld.sshfl [vmem:[#allocation1 + $0x18] sm:$0xff pattern:$0x73625140]
    %v956 = vld.sshfl [vmem:[#allocation1 + $0x20] sm:$0xff pattern:$0x73625140]
    %v957 = vld.sshfl [vmem:[#allocation1 + $0x28] sm:$0xff pattern:$0x73625140]
    %964 = vmatpush.msra.mxu0 %v281
    %965 = vmatpush.msra.mxu0 %v273
    %966 = vmatpush.msra.mxu0 %v265
    %967 = vmatpush.msra.mxu0 %v257
    %968 = vmatpush.msra.mxu0 %v249
    %969 = vmatpush.msra.mxu0 %v241
    %970 = vmatpush.msra.mxu0 %v233
    %971 = vmatpush.msra.mxu0 %v225
    %972 = vmatpush.msra.mxu0 %v217
    %973 = vmatpush.msra.mxu0 %v209
    %974 = vmatpush.msra.mxu0 %v201
    %975 = vmatpush.msra.mxu0 %v193
    %976 = vmatpush.msra.mxu0 %v185
    %977 = vmatpush.msra.mxu0 %v177
    %978 = vmatpush.msra.mxu0 %v169
    %979 = vmatpush.msra.mxu0 %v161
    %980 = vmatmul.f32.gmra.mxu0 %v952
    %v981 = vpop.f32.mrf.mxu0
    %v982 = vadd.f32 %v931, %v981
    %983 = vdwg.mxu0
    %984 = vmatpush.msra.mxu0 %v409
    %985 = vmatpush.msra.mxu0 %v401
    %986 = vmatpush.msra.mxu0 %v393
    %987 = vmatpush.msra.mxu0 %v385
    %988 = vmatpush.msra.mxu0 %v377
    %989 = vmatpush.msra.mxu0 %v369
    %990 = vmatpush.msra.mxu0 %v361
    %991 = vmatpush.msra.mxu0 %v353
    %992 = vmatpush.msra.mxu0 %v345
    %993 = vmatpush.msra.mxu0 %v337
    %994 = vmatpush.msra.mxu0 %v329
    %995 = vmatpush.msra.mxu0 %v321
    %996 = vmatpush.msra.mxu0 %v313
    %997 = vmatpush.msra.mxu0 %v305
    %998 = vmatpush.msra.mxu0 %v297
    %999 = vmatpush.msra.mxu0 %v289
    %1000 = vmatmul.f32.gmra.mxu0 %v953
    %v1001 = vpop.f32.mrf.mxu0
    %v1002 = vadd.f32 %v982, %v1001
    %1003 = vdwg.mxu0
    %1004 = vmatpush.msra.mxu0 %v537
    %1005 = vmatpush.msra.mxu0 %v529
    %1006 = vmatpush.msra.mxu0 %v521
    %1007 = vmatpush.msra.mxu0 %v513
    %1008 = vmatpush.msra.mxu0 %v505
    %1009 = vmatpush.msra.mxu0 %v497
    %1010 = vmatpush.msra.mxu0 %v489
    %1011 = vmatpush.msra.mxu0 %v481
    %1012 = vmatpush.msra.mxu0 %v473
    %1013 = vmatpush.msra.mxu0 %v465
    %1014 = vmatpush.msra.mxu0 %v457
    %1015 = vmatpush.msra.mxu0 %v449
    %1016 = vmatpush.msra.mxu0 %v441
    %1017 = vmatpush.msra.mxu0 %v433
    %1018 = vmatpush.msra.mxu0 %v425
    %1019 = vmatpush.msra.mxu0 %v417
    %1020 = vmatmul.f32.gmra.mxu0 %v954
    %v1021 = vpop.f32.mrf.mxu0
    %v1022 = vadd.f32 %v1002, %v1021
    %1023 = vdwg.mxu0
    %1024 = vmatpush.msra.mxu0 %v665
    %1025 = vmatpush.msra.mxu0 %v657
    %1026 = vmatpush.msra.mxu0 %v649
    %1027 = vmatpush.msra.mxu0 %v641
    %1028 = vmatpush.msra.mxu0 %v633
    %1029 = vmatpush.msra.mxu0 %v625
    %1030 = vmatpush.msra.mxu0 %v617
    %1031 = vmatpush.msra.mxu0 %v609
    %1032 = vmatpush.msra.mxu0 %v601
    %1033 = vmatpush.msra.mxu0 %v593
    %1034 = vmatpush.msra.mxu0 %v585
    %1035 = vmatpush.msra.mxu0 %v577
    %1036 = vmatpush.msra.mxu0 %v569
    %1037 = vmatpush.msra.mxu0 %v561
    %1038 = vmatpush.msra.mxu0 %v553
    %1039 = vmatpush.msra.mxu0 %v545
    %1040 = vmatmul.f32.gmra.mxu0 %v955
    %v1041 = vpop.f32.mrf.mxu0
    %v1042 = vadd.f32 %v1022, %v1041
    %1043 = vdwg.mxu0
    %1044 = vmatpush.msra.mxu0 %v793
    %1045 = vmatpush.msra.mxu0 %v785
    %1046 = vmatpush.msra.mxu0 %v777
    %1047 = vmatpush.msra.mxu0 %v769
    %1048 = vmatpush.msra.mxu0 %v761
    %1049 = vmatpush.msra.mxu0 %v753
    %1050 = vmatpush.msra.mxu0 %v745
    %1051 = vmatpush.msra.mxu0 %v737
    %1052 = vmatpush.msra.mxu0 %v729
    %1053 = vmatpush.msra.mxu0 %v721
    %1054 = vmatpush.msra.mxu0 %v713
    %1055 = vmatpush.msra.mxu0 %v705
    %1056 = vmatpush.msra.mxu0 %v697
    %1057 = vmatpush.msra.mxu0 %v689
    %1058 = vmatpush.msra.mxu0 %v681
    %1059 = vmatpush.msra.mxu0 %v673
    %1060 = vmatmul.f32.gmra.mxu0 %v956
    %v1061 = vpop.f32.mrf.mxu0
    %v1062 = vadd.f32 %v1042, %v1061
    %1063 = vdwg.mxu0
    %1064 = vmatpush.msra.mxu0 %v921
    %1065 = vmatpush.msra.mxu0 %v913
    %1066 = vmatpush.msra.mxu0 %v905
    %1067 = vmatpush.msra.mxu0 %v897
    %1068 = vmatpush.msra.mxu0 %v889
    %1069 = vmatpush.msra.mxu0 %v881
    %1070 = vmatpush.msra.mxu0 %v873
    %1071 = vmatpush.msra.mxu0 %v865
    %1072 = vmatpush.msra.mxu0 %v857
    %1073 = vmatpush.msra.mxu0 %v849
    %1074 = vmatpush.msra.mxu0 %v841
    %1075 = vmatpush.msra.mxu0 %v833
    %1076 = vmatpush.msra.mxu0 %v825
    %1077 = vmatpush.msra.mxu0 %v817
    %1078 = vmatpush.msra.mxu0 %v809
    %1079 = vmatpush.msra.mxu0 %v801
    %1080 = vmatmul.f32.gmra.mxu0 %v957
    %v1081 = vpop.f32.mrf.mxu0
    %v1082 = vadd.f32 %v1062, %v1081
    %1083 = vdwg.mxu0
    %1084 = vmatpush.msra.mxu0 %v282
    %1085 = vmatpush.msra.mxu0 %v274
    %1086 = vmatpush.msra.mxu0 %v266
    %1087 = vmatpush.msra.mxu0 %v258
    %1088 = vmatpush.msra.mxu0 %v250
    %1089 = vmatpush.msra.mxu0 %v242
    %1090 = vmatpush.msra.mxu0 %v234
    %1091 = vmatpush.msra.mxu0 %v226
    %1092 = vmatpush.msra.mxu0 %v218
    %1093 = vmatpush.msra.mxu0 %v210
    %1094 = vmatpush.msra.mxu0 %v202
    %1095 = vmatpush.msra.mxu0 %v194
    %1096 = vmatpush.msra.mxu0 %v186
    %1097 = vmatpush.msra.mxu0 %v178
    %1098 = vmatpush.msra.mxu0 %v170
    %1099 = vmatpush.msra.mxu0 %v162
    %1100 = vmatmul.f32.gmra.mxu0 %v952
    %v1101 = vpop.f32.mrf.mxu0
    %v1102 = vadd.f32 %v932, %v1101
    %1103 = vdwg.mxu0
    %1104 = vmatpush.msra.mxu0 %v410
    %1105 = vmatpush.msra.mxu0 %v402
    %1106 = vmatpush.msra.mxu0 %v394
    %1107 = vmatpush.msra.mxu0 %v386
    %1108 = vmatpush.msra.mxu0 %v378
    %1109 = vmatpush.msra.mxu0 %v370
    %1110 = vmatpush.msra.mxu0 %v362
    %1111 = vmatpush.msra.mxu0 %v354
    %1112 = vmatpush.msra.mxu0 %v346
    %1113 = vmatpush.msra.mxu0 %v338
    %1114 = vmatpush.msra.mxu0 %v330
    %1115 = vmatpush.msra.mxu0 %v322
    %1116 = vmatpush.msra.mxu0 %v314
    %1117 = vmatpush.msra.mxu0 %v306
    %1118 = vmatpush.msra.mxu0 %v298
    %1119 = vmatpush.msra.mxu0 %v290
    %1120 = vmatmul.f32.gmra.mxu0 %v953
    %v1121 = vpop.f32.mrf.mxu0
    %v1122 = vadd.f32 %v1102, %v1121
    %1123 = vdwg.mxu0
    %1124 = vmatpush.msra.mxu0 %v538
    %1125 = vmatpush.msra.mxu0 %v530
    %1126 = vmatpush.msra.mxu0 %v522
    %1127 = vmatpush.msra.mxu0 %v514
    %1128 = vmatpush.msra.mxu0 %v506
    %1129 = vmatpush.msra.mxu0 %v498
    %1130 = vmatpush.msra.mxu0 %v490
    %1131 = vmatpush.msra.mxu0 %v482
    %1132 = vmatpush.msra.mxu0 %v474
    %1133 = vmatpush.msra.mxu0 %v466
    %1134 = vmatpush.msra.mxu0 %v458
    %1135 = vmatpush.msra.mxu0 %v450
    %1136 = vmatpush.msra.mxu0 %v442
    %1137 = vmatpush.msra.mxu0 %v434
    %1138 = vmatpush.msra.mxu0 %v426
    %1139 = vmatpush.msra.mxu0 %v418
    %1140 = vmatmul.f32.gmra.mxu0 %v954
    %v1141 = vpop.f32.mrf.mxu0
    %v1142 = vadd.f32 %v1122, %v1141
    %1143 = vdwg.mxu0
    %1144 = vmatpush.msra.mxu0 %v666
    %1145 = vmatpush.msra.mxu0 %v658
    %1146 = vmatpush.msra.mxu0 %v650
    %1147 = vmatpush.msra.mxu0 %v642
    %1148 = vmatpush.msra.mxu0 %v634
    %1149 = vmatpush.msra.mxu0 %v626
    %1150 = vmatpush.msra.mxu0 %v618
    %1151 = vmatpush.msra.mxu0 %v610
    %1152 = vmatpush.msra.mxu0 %v602
    %1153 = vmatpush.msra.mxu0 %v594
    %1154 = vmatpush.msra.mxu0 %v586
    %1155 = vmatpush.msra.mxu0 %v578
    %1156 = vmatpush.msra.mxu0 %v570
    %1157 = vmatpush.msra.mxu0 %v562
    %1158 = vmatpush.msra.mxu0 %v554
    %1159 = vmatpush.msra.mxu0 %v546
    %1160 = vmatmul.f32.gmra.mxu0 %v955
    %v1161 = vpop.f32.mrf.mxu0
    %v1162 = vadd.f32 %v1142, %v1161
    %1163 = vdwg.mxu0
    %1164 = vmatpush.msra.mxu0 %v794
    %1165 = vmatpush.msra.mxu0 %v786
    %1166 = vmatpush.msra.mxu0 %v778
    %1167 = vmatpush.msra.mxu0 %v770
    %1168 = vmatpush.msra.mxu0 %v762
    %1169 = vmatpush.msra.mxu0 %v754
    %1170 = vmatpush.msra.mxu0 %v746
    %1171 = vmatpush.msra.mxu0 %v738
    %1172 = vmatpush.msra.mxu0 %v730
    %1173 = vmatpush.msra.mxu0 %v722
    %1174 = vmatpush.msra.mxu0 %v714
    %1175 = vmatpush.msra.mxu0 %v706
    %1176 = vmatpush.msra.mxu0 %v698
    %1177 = vmatpush.msra.mxu0 %v690
    %1178 = vmatpush.msra.mxu0 %v682
    %1179 = vmatpush.msra.mxu0 %v674
    %1180 = vmatmul.f32.gmra.mxu0 %v956
    %v1181 = vpop.f32.mrf.mxu0
    %v1182 = vadd.f32 %v1162, %v1181
    %1183 = vdwg.mxu0
    %1184 = vmatpush.msra.mxu0 %v922
    %1185 = vmatpush.msra.mxu0 %v914
    %1186 = vmatpush.msra.mxu0 %v906
    %1187 = vmatpush.msra.mxu0 %v898
    %1188 = vmatpush.msra.mxu0 %v890
    %1189 = vmatpush.msra.mxu0 %v882
    %1190 = vmatpush.msra.mxu0 %v874
    %1191 = vmatpush.msra.mxu0 %v866
    %1192 = vmatpush.msra.mxu0 %v858
    %1193 = vmatpush.msra.mxu0 %v850
    %1194 = vmatpush.msra.mxu0 %v842
    %1195 = vmatpush.msra.mxu0 %v834
    %1196 = vmatpush.msra.mxu0 %v826
    %1197 = vmatpush.msra.mxu0 %v818
    %1198 = vmatpush.msra.mxu0 %v810
    %1199 = vmatpush.msra.mxu0 %v802
    %1200 = vmatmul.f32.gmra.mxu0 %v957
    %v1201 = vpop.f32.mrf.mxu0
    %v1202 = vadd.f32 %v1182, %v1201
    %1203 = vdwg.mxu0
    %1204 = vmatpush.msra.mxu0 %v283
    %1205 = vmatpush.msra.mxu0 %v275
    %1206 = vmatpush.msra.mxu0 %v267
    %1207 = vmatpush.msra.mxu0 %v259
    %1208 = vmatpush.msra.mxu0 %v251
    %1209 = vmatpush.msra.mxu0 %v243
    %1210 = vmatpush.msra.mxu0 %v235
    %1211 = vmatpush.msra.mxu0 %v227
    %1212 = vmatpush.msra.mxu0 %v219
    %1213 = vmatpush.msra.mxu0 %v211
    %1214 = vmatpush.msra.mxu0 %v203
    %1215 = vmatpush.msra.mxu0 %v195
    %1216 = vmatpush.msra.mxu0 %v187
    %1217 = vmatpush.msra.mxu0 %v179
    %1218 = vmatpush.msra.mxu0 %v171
    %1219 = vmatpush.msra.mxu0 %v163
    %1220 = vmatmul.f32.gmra.mxu0 %v952
    %v1221 = vpop.f32.mrf.mxu0
    %v1222 = vadd.f32 %v933, %v1221
    %1223 = vdwg.mxu0
    %1224 = vmatpush.msra.mxu0 %v411
    %1225 = vmatpush.msra.mxu0 %v403
    %1226 = vmatpush.msra.mxu0 %v395
    %1227 = vmatpush.msra.mxu0 %v387
    %1228 = vmatpush.msra.mxu0 %v379
    %1229 = vmatpush.msra.mxu0 %v371
    %1230 = vmatpush.msra.mxu0 %v363
    %1231 = vmatpush.msra.mxu0 %v355
    %1232 = vmatpush.msra.mxu0 %v347
    %1233 = vmatpush.msra.mxu0 %v339
    %1234 = vmatpush.msra.mxu0 %v331
    %1235 = vmatpush.msra.mxu0 %v323
    %1236 = vmatpush.msra.mxu0 %v315
    %1237 = vmatpush.msra.mxu0 %v307
    %1238 = vmatpush.msra.mxu0 %v299
    %1239 = vmatpush.msra.mxu0 %v291
    %1240 = vmatmul.f32.gmra.mxu0 %v953
    %v1241 = vpop.f32.mrf.mxu0
    %v1242 = vadd.f32 %v1222, %v1241
    %1243 = vdwg.mxu0
    %1244 = vmatpush.msra.mxu0 %v539
    %1245 = vmatpush.msra.mxu0 %v531
    %1246 = vmatpush.msra.mxu0 %v523
    %1247 = vmatpush.msra.mxu0 %v515
    %1248 = vmatpush.msra.mxu0 %v507
    %1249 = vmatpush.msra.mxu0 %v499
    %1250 = vmatpush.msra.mxu0 %v491
    %1251 = vmatpush.msra.mxu0 %v483
    %1252 = vmatpush.msra.mxu0 %v475
    %1253 = vmatpush.msra.mxu0 %v467
    %1254 = vmatpush.msra.mxu0 %v459
    %1255 = vmatpush.msra.mxu0 %v451
    %1256 = vmatpush.msra.mxu0 %v443
    %1257 = vmatpush.msra.mxu0 %v435
    %1258 = vmatpush.msra.mxu0 %v427
    %1259 = vmatpush.msra.mxu0 %v419
    %1260 = vmatmul.f32.gmra.mxu0 %v954
    %v1261 = vpop.f32.mrf.mxu0
    %v1262 = vadd.f32 %v1242, %v1261
    %1263 = vdwg.mxu0
    %1264 = vmatpush.msra.mxu0 %v667
    %1265 = vmatpush.msra.mxu0 %v659
    %1266 = vmatpush.msra.mxu0 %v651
    %1267 = vmatpush.msra.mxu0 %v643
    %1268 = vmatpush.msra.mxu0 %v635
    %1269 = vmatpush.msra.mxu0 %v627
    %1270 = vmatpush.msra.mxu0 %v619
    %1271 = vmatpush.msra.mxu0 %v611
    %1272 = vmatpush.msra.mxu0 %v603
    %1273 = vmatpush.msra.mxu0 %v595
    %1274 = vmatpush.msra.mxu0 %v587
    %1275 = vmatpush.msra.mxu0 %v579
    %1276 = vmatpush.msra.mxu0 %v571
    %1277 = vmatpush.msra.mxu0 %v563
    %1278 = vmatpush.msra.mxu0 %v555
    %1279 = vmatpush.msra.mxu0 %v547
    %1280 = vmatmul.f32.gmra.mxu0 %v955
    %v1281 = vpop.f32.mrf.mxu0
    %v1282 = vadd.f32 %v1262, %v1281
    %1283 = vdwg.mxu0
    %1284 = vmatpush.msra.mxu0 %v795
    %1285 = vmatpush.msra.mxu0 %v787
    %1286 = vmatpush.msra.mxu0 %v779
    %1287 = vmatpush.msra.mxu0 %v771
    %1288 = vmatpush.msra.mxu0 %v763
    %1289 = vmatpush.msra.mxu0 %v755
    %1290 = vmatpush.msra.mxu0 %v747
    %1291 = vmatpush.msra.mxu0 %v739
    %1292 = vmatpush.msra.mxu0 %v731
    %1293 = vmatpush.msra.mxu0 %v723
    %1294 = vmatpush.msra.mxu0 %v715
    %1295 = vmatpush.msra.mxu0 %v707
    %1296 = vmatpush.msra.mxu0 %v699
    %1297 = vmatpush.msra.mxu0 %v691
    %1298 = vmatpush.msra.mxu0 %v683
    %1299 = vmatpush.msra.mxu0 %v675
    %1300 = vmatmul.f32.gmra.mxu0 %v956
    %v1301 = vpop.f32.mrf.mxu0
    %v1302 = vadd.f32 %v1282, %v1301
    %1303 = vdwg.mxu0
    %1304 = vmatpush.msra.mxu0 %v923
    %1305 = vmatpush.msra.mxu0 %v915
    %1306 = vmatpush.msra.mxu0 %v907
    %1307 = vmatpush.msra.mxu0 %v899
    %1308 = vmatpush.msra.mxu0 %v891
    %1309 = vmatpush.msra.mxu0 %v883
    %1310 = vmatpush.msra.mxu0 %v875
    %1311 = vmatpush.msra.mxu0 %v867
    %1312 = vmatpush.msra.mxu0 %v859
    %1313 = vmatpush.msra.mxu0 %v851
    %1314 = vmatpush.msra.mxu0 %v843
    %1315 = vmatpush.msra.mxu0 %v835
    %1316 = vmatpush.msra.mxu0 %v827
    %1317 = vmatpush.msra.mxu0 %v819
    %1318 = vmatpush.msra.mxu0 %v811
    %1319 = vmatpush.msra.mxu0 %v803
    %1320 = vmatmul.f32.gmra.mxu0 %v957
    %v1321 = vpop.f32.mrf.mxu0
    %v1322 = vadd.f32 %v1302, %v1321
    %1323 = vdwg.mxu0
    %1324 = vmatpush.msra.mxu0 %v284
    %1325 = vmatpush.msra.mxu0 %v276
    %1326 = vmatpush.msra.mxu0 %v268
    %1327 = vmatpush.msra.mxu0 %v260
    %1328 = vmatpush.msra.mxu0 %v252
    %1329 = vmatpush.msra.mxu0 %v244
    %1330 = vmatpush.msra.mxu0 %v236
    %1331 = vmatpush.msra.mxu0 %v228
    %1332 = vmatpush.msra.mxu0 %v220
    %1333 = vmatpush.msra.mxu0 %v212
    %1334 = vmatpush.msra.mxu0 %v204
    %1335 = vmatpush.msra.mxu0 %v196
    %1336 = vmatpush.msra.mxu0 %v188
    %1337 = vmatpush.msra.mxu0 %v180
    %1338 = vmatpush.msra.mxu0 %v172
    %1339 = vmatpush.msra.mxu0 %v164
    %1340 = vmatmul.f32.gmra.mxu0 %v952
    %v1341 = vpop.f32.mrf.mxu0
    %v1342 = vadd.f32 %v934, %v1341
    %1343 = vdwg.mxu0
    %1344 = vmatpush.msra.mxu0 %v412
    %1345 = vmatpush.msra.mxu0 %v404
    %1346 = vmatpush.msra.mxu0 %v396
    %1347 = vmatpush.msra.mxu0 %v388
    %1348 = vmatpush.msra.mxu0 %v380
    %1349 = vmatpush.msra.mxu0 %v372
    %1350 = vmatpush.msra.mxu0 %v364
    %1351 = vmatpush.msra.mxu0 %v356
    %1352 = vmatpush.msra.mxu0 %v348
    %1353 = vmatpush.msra.mxu0 %v340
    %1354 = vmatpush.msra.mxu0 %v332
    %1355 = vmatpush.msra.mxu0 %v324
    %1356 = vmatpush.msra.mxu0 %v316
    %1357 = vmatpush.msra.mxu0 %v308
    %1358 = vmatpush.msra.mxu0 %v300
    %1359 = vmatpush.msra.mxu0 %v292
    %1360 = vmatmul.f32.gmra.mxu0 %v953
    %v1361 = vpop.f32.mrf.mxu0
    %v1362 = vadd.f32 %v1342, %v1361
    %1363 = vdwg.mxu0
    %1364 = vmatpush.msra.mxu0 %v540
    %1365 = vmatpush.msra.mxu0 %v532
    %1366 = vmatpush.msra.mxu0 %v524
    %1367 = vmatpush.msra.mxu0 %v516
    %1368 = vmatpush.msra.mxu0 %v508
    %1369 = vmatpush.msra.mxu0 %v500
    %1370 = vmatpush.msra.mxu0 %v492
    %1371 = vmatpush.msra.mxu0 %v484
    %1372 = vmatpush.msra.mxu0 %v476
    %1373 = vmatpush.msra.mxu0 %v468
    %1374 = vmatpush.msra.mxu0 %v460
    %1375 = vmatpush.msra.mxu0 %v452
    %1376 = vmatpush.msra.mxu0 %v444
    %1377 = vmatpush.msra.mxu0 %v436
    %1378 = vmatpush.msra.mxu0 %v428
    %1379 = vmatpush.msra.mxu0 %v420
    %1380 = vmatmul.f32.gmra.mxu0 %v954
    %v1381 = vpop.f32.mrf.mxu0
    %v1382 = vadd.f32 %v1362, %v1381
    %1383 = vdwg.mxu0
    %1384 = vmatpush.msra.mxu0 %v668
    %1385 = vmatpush.msra.mxu0 %v660
    %1386 = vmatpush.msra.mxu0 %v652
    %1387 = vmatpush.msra.mxu0 %v644
    %1388 = vmatpush.msra.mxu0 %v636
    %1389 = vmatpush.msra.mxu0 %v628
    %1390 = vmatpush.msra.mxu0 %v620
    %1391 = vmatpush.msra.mxu0 %v612
    %1392 = vmatpush.msra.mxu0 %v604
    %1393 = vmatpush.msra.mxu0 %v596
    %1394 = vmatpush.msra.mxu0 %v588
    %1395 = vmatpush.msra.mxu0 %v580
    %1396 = vmatpush.msra.mxu0 %v572
    %1397 = vmatpush.msra.mxu0 %v564
    %1398 = vmatpush.msra.mxu0 %v556
    %1399 = vmatpush.msra.mxu0 %v548
    %1400 = vmatmul.f32.gmra.mxu0 %v955
    %v1401 = vpop.f32.mrf.mxu0
    %v1402 = vadd.f32 %v1382, %v1401
    %1403 = vdwg.mxu0
    %1404 = vmatpush.msra.mxu0 %v796
    %1405 = vmatpush.msra.mxu0 %v788
    %1406 = vmatpush.msra.mxu0 %v780
    %1407 = vmatpush.msra.mxu0 %v772
    %1408 = vmatpush.msra.mxu0 %v764
    %1409 = vmatpush.msra.mxu0 %v756
    %1410 = vmatpush.msra.mxu0 %v748
    %1411 = vmatpush.msra.mxu0 %v740
    %1412 = vmatpush.msra.mxu0 %v732
    %1413 = vmatpush.msra.mxu0 %v724
    %1414 = vmatpush.msra.mxu0 %v716
    %1415 = vmatpush.msra.mxu0 %v708
    %1416 = vmatpush.msra.mxu0 %v700
    %1417 = vmatpush.msra.mxu0 %v692
    %1418 = vmatpush.msra.mxu0 %v684
    %1419 = vmatpush.msra.mxu0 %v676
    %1420 = vmatmul.f32.gmra.mxu0 %v956
    %v1421 = vpop.f32.mrf.mxu0
    %v1422 = vadd.f32 %v1402, %v1421
    %1423 = vdwg.mxu0
    %1424 = vmatpush.msra.mxu0 %v924
    %1425 = vmatpush.msra.mxu0 %v916
    %1426 = vmatpush.msra.mxu0 %v908
    %1427 = vmatpush.msra.mxu0 %v900
    %1428 = vmatpush.msra.mxu0 %v892
    %1429 = vmatpush.msra.mxu0 %v884
    %1430 = vmatpush.msra.mxu0 %v876
    %1431 = vmatpush.msra.mxu0 %v868
    %1432 = vmatpush.msra.mxu0 %v860
    %1433 = vmatpush.msra.mxu0 %v852
    %1434 = vmatpush.msra.mxu0 %v844
    %1435 = vmatpush.msra.mxu0 %v836
    %1436 = vmatpush.msra.mxu0 %v828
    %1437 = vmatpush.msra.mxu0 %v820
    %1438 = vmatpush.msra.mxu0 %v812
    %1439 = vmatpush.msra.mxu0 %v804
    %1440 = vmatmul.f32.gmra.mxu0 %v957
    %v1441 = vpop.f32.mrf.mxu0
    %v1442 = vadd.f32 %v1422, %v1441
    %1443 = vdwg.mxu0
    %1444 = vmatpush.msra.mxu0 %v285
    %1445 = vmatpush.msra.mxu0 %v277
    %1446 = vmatpush.msra.mxu0 %v269
    %1447 = vmatpush.msra.mxu0 %v261
    %1448 = vmatpush.msra.mxu0 %v253
    %1449 = vmatpush.msra.mxu0 %v245
    %1450 = vmatpush.msra.mxu0 %v237
    %1451 = vmatpush.msra.mxu0 %v229
    %1452 = vmatpush.msra.mxu0 %v221
    %1453 = vmatpush.msra.mxu0 %v213
    %1454 = vmatpush.msra.mxu0 %v205
    %1455 = vmatpush.msra.mxu0 %v197
    %1456 = vmatpush.msra.mxu0 %v189
    %1457 = vmatpush.msra.mxu0 %v181
    %1458 = vmatpush.msra.mxu0 %v173
    %1459 = vmatpush.msra.mxu0 %v165
    %1460 = vmatmul.f32.gmra.mxu0 %v952
    %v1461 = vpop.f32.mrf.mxu0
    %v1462 = vadd.f32 %v935, %v1461
    %1463 = vdwg.mxu0
    %1464 = vmatpush.msra.mxu0 %v413
    %1465 = vmatpush.msra.mxu0 %v405
    %1466 = vmatpush.msra.mxu0 %v397
    %1467 = vmatpush.msra.mxu0 %v389
    %1468 = vmatpush.msra.mxu0 %v381
    %1469 = vmatpush.msra.mxu0 %v373
    %1470 = vmatpush.msra.mxu0 %v365
    %1471 = vmatpush.msra.mxu0 %v357
    %1472 = vmatpush.msra.mxu0 %v349
    %1473 = vmatpush.msra.mxu0 %v341
    %1474 = vmatpush.msra.mxu0 %v333
    %1475 = vmatpush.msra.mxu0 %v325
    %1476 = vmatpush.msra.mxu0 %v317
    %1477 = vmatpush.msra.mxu0 %v309
    %1478 = vmatpush.msra.mxu0 %v301
    %1479 = vmatpush.msra.mxu0 %v293
    %1480 = vmatmul.f32.gmra.mxu0 %v953
    %v1481 = vpop.f32.mrf.mxu0
    %v1482 = vadd.f32 %v1462, %v1481
    %1483 = vdwg.mxu0
    %1484 = vmatpush.msra.mxu0 %v541
    %1485 = vmatpush.msra.mxu0 %v533
    %1486 = vmatpush.msra.mxu0 %v525
    %1487 = vmatpush.msra.mxu0 %v517
    %1488 = vmatpush.msra.mxu0 %v509
    %1489 = vmatpush.msra.mxu0 %v501
    %1490 = vmatpush.msra.mxu0 %v493
    %1491 = vmatpush.msra.mxu0 %v485
    %1492 = vmatpush.msra.mxu0 %v477
    %1493 = vmatpush.msra.mxu0 %v469
    %1494 = vmatpush.msra.mxu0 %v461
    %1495 = vmatpush.msra.mxu0 %v453
    %1496 = vmatpush.msra.mxu0 %v445
    %1497 = vmatpush.msra.mxu0 %v437
    %1498 = vmatpush.msra.mxu0 %v429
    %1499 = vmatpush.msra.mxu0 %v421
    %1500 = vmatmul.f32.gmra.mxu0 %v954
    %v1501 = vpop.f32.mrf.mxu0
    %v1502 = vadd.f32 %v1482, %v1501
    %1503 = vdwg.mxu0
    %1504 = vmatpush.msra.mxu0 %v669
    %1505 = vmatpush.msra.mxu0 %v661
    %1506 = vmatpush.msra.mxu0 %v653
    %1507 = vmatpush.msra.mxu0 %v645
    %1508 = vmatpush.msra.mxu0 %v637
    %1509 = vmatpush.msra.mxu0 %v629
    %1510 = vmatpush.msra.mxu0 %v621
    %1511 = vmatpush.msra.mxu0 %v613
    %1512 = vmatpush.msra.mxu0 %v605
    %1513 = vmatpush.msra.mxu0 %v597
    %1514 = vmatpush.msra.mxu0 %v589
    %1515 = vmatpush.msra.mxu0 %v581
    %1516 = vmatpush.msra.mxu0 %v573
    %1517 = vmatpush.msra.mxu0 %v565
    %1518 = vmatpush.msra.mxu0 %v557
    %1519 = vmatpush.msra.mxu0 %v549
    %1520 = vmatmul.f32.gmra.mxu0 %v955
    %v1521 = vpop.f32.mrf.mxu0
    %v1522 = vadd.f32 %v1502, %v1521
    %1523 = vdwg.mxu0
    %1524 = vmatpush.msra.mxu0 %v797
    %1525 = vmatpush.msra.mxu0 %v789
    %1526 = vmatpush.msra.mxu0 %v781
    %1527 = vmatpush.msra.mxu0 %v773
    %1528 = vmatpush.msra.mxu0 %v765
    %1529 = vmatpush.msra.mxu0 %v757
    %1530 = vmatpush.msra.mxu0 %v749
    %1531 = vmatpush.msra.mxu0 %v741
    %1532 = vmatpush.msra.mxu0 %v733
    %1533 = vmatpush.msra.mxu0 %v725
    %1534 = vmatpush.msra.mxu0 %v717
    %1535 = vmatpush.msra.mxu0 %v709
    %1536 = vmatpush.msra.mxu0 %v701
    %1537 = vmatpush.msra.mxu0 %v693
    %1538 = vmatpush.msra.mxu0 %v685
    %1539 = vmatpush.msra.mxu0 %v677
    %1540 = vmatmul.f32.gmra.mxu0 %v956
    %v1541 = vpop.f32.mrf.mxu0
    %v1542 = vadd.f32 %v1522, %v1541
    %1543 = vdwg.mxu0
    %1544 = vmatpush.msra.mxu0 %v925
    %1545 = vmatpush.msra.mxu0 %v917
    %1546 = vmatpush.msra.mxu0 %v909
    %1547 = vmatpush.msra.mxu0 %v901
    %1548 = vmatpush.msra.mxu0 %v893
    %1549 = vmatpush.msra.mxu0 %v885
    %1550 = vmatpush.msra.mxu0 %v877
    %1551 = vmatpush.msra.mxu0 %v869
    %1552 = vmatpush.msra.mxu0 %v861
    %1553 = vmatpush.msra.mxu0 %v853
    %1554 = vmatpush.msra.mxu0 %v845
    %1555 = vmatpush.msra.mxu0 %v837
    %1556 = vmatpush.msra.mxu0 %v829
    %1557 = vmatpush.msra.mxu0 %v821
    %1558 = vmatpush.msra.mxu0 %v813
    %1559 = vmatpush.msra.mxu0 %v805
    %1560 = vmatmul.f32.gmra.mxu0 %v957
    %v1561 = vpop.f32.mrf.mxu0
    %v1562 = vadd.f32 %v1542, %v1561
    %1563 = vdwg.mxu0
    %1564 = vmatpush.msra.mxu0 %v286
    %1565 = vmatpush.msra.mxu0 %v278
    %1566 = vmatpush.msra.mxu0 %v270
    %1567 = vmatpush.msra.mxu0 %v262
    %1568 = vmatpush.msra.mxu0 %v254
    %1569 = vmatpush.msra.mxu0 %v246
    %1570 = vmatpush.msra.mxu0 %v238
    %1571 = vmatpush.msra.mxu0 %v230
    %1572 = vmatpush.msra.mxu0 %v222
    %1573 = vmatpush.msra.mxu0 %v214
    %1574 = vmatpush.msra.mxu0 %v206
    %1575 = vmatpush.msra.mxu0 %v198
    %1576 = vmatpush.msra.mxu0 %v190
    %1577 = vmatpush.msra.mxu0 %v182
    %1578 = vmatpush.msra.mxu0 %v174
    %1579 = vmatpush.msra.mxu0 %v166
    %1580 = vmatmul.f32.gmra.mxu0 %v952
    %v1581 = vpop.f32.mrf.mxu0
    %v1582 = vadd.f32 %v936, %v1581
    %1583 = vdwg.mxu0
    %1584 = vmatpush.msra.mxu0 %v414
    %1585 = vmatpush.msra.mxu0 %v406
    %1586 = vmatpush.msra.mxu0 %v398
    %1587 = vmatpush.msra.mxu0 %v390
    %1588 = vmatpush.msra.mxu0 %v382
    %1589 = vmatpush.msra.mxu0 %v374
    %1590 = vmatpush.msra.mxu0 %v366
    %1591 = vmatpush.msra.mxu0 %v358
    %1592 = vmatpush.msra.mxu0 %v350
    %1593 = vmatpush.msra.mxu0 %v342
    %1594 = vmatpush.msra.mxu0 %v334
    %1595 = vmatpush.msra.mxu0 %v326
    %1596 = vmatpush.msra.mxu0 %v318
    %1597 = vmatpush.msra.mxu0 %v310
    %1598 = vmatpush.msra.mxu0 %v302
    %1599 = vmatpush.msra.mxu0 %v294
    %1600 = vmatmul.f32.gmra.mxu0 %v953
    %v1601 = vpop.f32.mrf.mxu0
    %v1602 = vadd.f32 %v1582, %v1601
    %1603 = vdwg.mxu0
    %1604 = vmatpush.msra.mxu0 %v542
    %1605 = vmatpush.msra.mxu0 %v534
    %1606 = vmatpush.msra.mxu0 %v526
    %1607 = vmatpush.msra.mxu0 %v518
    %1608 = vmatpush.msra.mxu0 %v510
    %1609 = vmatpush.msra.mxu0 %v502
    %1610 = vmatpush.msra.mxu0 %v494
    %1611 = vmatpush.msra.mxu0 %v486
    %1612 = vmatpush.msra.mxu0 %v478
    %1613 = vmatpush.msra.mxu0 %v470
    %1614 = vmatpush.msra.mxu0 %v462
    %1615 = vmatpush.msra.mxu0 %v454
    %1616 = vmatpush.msra.mxu0 %v446
    %1617 = vmatpush.msra.mxu0 %v438
    %1618 = vmatpush.msra.mxu0 %v430
    %1619 = vmatpush.msra.mxu0 %v422
    %1620 = vmatmul.f32.gmra.mxu0 %v954
    %v1621 = vpop.f32.mrf.mxu0
    %v1622 = vadd.f32 %v1602, %v1621
    %1623 = vdwg.mxu0
    %1624 = vmatpush.msra.mxu0 %v670
    %1625 = vmatpush.msra.mxu0 %v662
    %1626 = vmatpush.msra.mxu0 %v654
    %1627 = vmatpush.msra.mxu0 %v646
    %1628 = vmatpush.msra.mxu0 %v638
    %1629 = vmatpush.msra.mxu0 %v630
    %1630 = vmatpush.msra.mxu0 %v622
    %1631 = vmatpush.msra.mxu0 %v614
    %1632 = vmatpush.msra.mxu0 %v606
    %1633 = vmatpush.msra.mxu0 %v598
    %1634 = vmatpush.msra.mxu0 %v590
    %1635 = vmatpush.msra.mxu0 %v582
    %1636 = vmatpush.msra.mxu0 %v574
    %1637 = vmatpush.msra.mxu0 %v566
    %1638 = vmatpush.msra.mxu0 %v558
    %1639 = vmatpush.msra.mxu0 %v550
    %1640 = vmatmul.f32.gmra.mxu0 %v955
    %v1641 = vpop.f32.mrf.mxu0
    %v1642 = vadd.f32 %v1622, %v1641
    %1643 = vdwg.mxu0
    %1644 = vmatpush.msra.mxu0 %v798
    %1645 = vmatpush.msra.mxu0 %v790
    %1646 = vmatpush.msra.mxu0 %v782
    %1647 = vmatpush.msra.mxu0 %v774
    %1648 = vmatpush.msra.mxu0 %v766
    %1649 = vmatpush.msra.mxu0 %v758
    %1650 = vmatpush.msra.mxu0 %v750
    %1651 = vmatpush.msra.mxu0 %v742
    %1652 = vmatpush.msra.mxu0 %v734
    %1653 = vmatpush.msra.mxu0 %v726
    %1654 = vmatpush.msra.mxu0 %v718
    %1655 = vmatpush.msra.mxu0 %v710
    %1656 = vmatpush.msra.mxu0 %v702
    %1657 = vmatpush.msra.mxu0 %v694
    %1658 = vmatpush.msra.mxu0 %v686
    %1659 = vmatpush.msra.mxu0 %v678
    %1660 = vmatmul.f32.gmra.mxu0 %v956
    %v1661 = vpop.f32.mrf.mxu0
    %v1662 = vadd.f32 %v1642, %v1661
    %1663 = vdwg.mxu0
    %1664 = vmatpush.msra.mxu0 %v926
    %1665 = vmatpush.msra.mxu0 %v918
    %1666 = vmatpush.msra.mxu0 %v910
    %1667 = vmatpush.msra.mxu0 %v902
    %1668 = vmatpush.msra.mxu0 %v894
    %1669 = vmatpush.msra.mxu0 %v886
    %1670 = vmatpush.msra.mxu0 %v878
    %1671 = vmatpush.msra.mxu0 %v870
    %1672 = vmatpush.msra.mxu0 %v862
    %1673 = vmatpush.msra.mxu0 %v854
    %1674 = vmatpush.msra.mxu0 %v846
    %1675 = vmatpush.msra.mxu0 %v838
    %1676 = vmatpush.msra.mxu0 %v830
    %1677 = vmatpush.msra.mxu0 %v822
    %1678 = vmatpush.msra.mxu0 %v814
    %1679 = vmatpush.msra.mxu0 %v806
    %1680 = vmatmul.f32.gmra.mxu0 %v957
    %v1681 = vpop.f32.mrf.mxu0
    %v1682 = vadd.f32 %v1662, %v1681
    %1683 = vdwg.mxu0
    %1684 = vmatpush.msra.mxu0 %v287
    %1685 = vmatpush.msra.mxu0 %v279
    %1686 = vmatpush.msra.mxu0 %v271
    %1687 = vmatpush.msra.mxu0 %v263
    %1688 = vmatpush.msra.mxu0 %v255
    %1689 = vmatpush.msra.mxu0 %v247
    %1690 = vmatpush.msra.mxu0 %v239
    %1691 = vmatpush.msra.mxu0 %v231
    %1692 = vmatpush.msra.mxu0 %v223
    %1693 = vmatpush.msra.mxu0 %v215
    %1694 = vmatpush.msra.mxu0 %v207
    %1695 = vmatpush.msra.mxu0 %v199
    %1696 = vmatpush.msra.mxu0 %v191
    %1697 = vmatpush.msra.mxu0 %v183
    %1698 = vmatpush.msra.mxu0 %v175
    %1699 = vmatpush.msra.mxu0 %v167
    %1700 = vmatmul.f32.gmra.mxu0 %v952
    %v1701 = vpop.f32.mrf.mxu0
    %v1702 = vadd.f32 %v937, %v1701
    %1703 = vdwg.mxu0
    %1704 = vmatpush.msra.mxu0 %v415
    %1705 = vmatpush.msra.mxu0 %v407
    %1706 = vmatpush.msra.mxu0 %v399
    %1707 = vmatpush.msra.mxu0 %v391
    %1708 = vmatpush.msra.mxu0 %v383
    %1709 = vmatpush.msra.mxu0 %v375
    %1710 = vmatpush.msra.mxu0 %v367
    %1711 = vmatpush.msra.mxu0 %v359
    %1712 = vmatpush.msra.mxu0 %v351
    %1713 = vmatpush.msra.mxu0 %v343
    %1714 = vmatpush.msra.mxu0 %v335
    %1715 = vmatpush.msra.mxu0 %v327
    %1716 = vmatpush.msra.mxu0 %v319
    %1717 = vmatpush.msra.mxu0 %v311
    %1718 = vmatpush.msra.mxu0 %v303
    %1719 = vmatpush.msra.mxu0 %v295
    %1720 = vmatmul.f32.gmra.mxu0 %v953
    %v1721 = vpop.f32.mrf.mxu0
    %v1722 = vadd.f32 %v1702, %v1721
    %1723 = vdwg.mxu0
    %1724 = vmatpush.msra.mxu0 %v543
    %1725 = vmatpush.msra.mxu0 %v535
    %1726 = vmatpush.msra.mxu0 %v527
    %1727 = vmatpush.msra.mxu0 %v519
    %1728 = vmatpush.msra.mxu0 %v511
    %1729 = vmatpush.msra.mxu0 %v503
    %1730 = vmatpush.msra.mxu0 %v495
    %1731 = vmatpush.msra.mxu0 %v487
    %1732 = vmatpush.msra.mxu0 %v479
    %1733 = vmatpush.msra.mxu0 %v471
    %1734 = vmatpush.msra.mxu0 %v463
    %1735 = vmatpush.msra.mxu0 %v455
    %1736 = vmatpush.msra.mxu0 %v447
    %1737 = vmatpush.msra.mxu0 %v439
    %1738 = vmatpush.msra.mxu0 %v431
    %1739 = vmatpush.msra.mxu0 %v423
    %1740 = vmatmul.f32.gmra.mxu0 %v954
    %v1741 = vpop.f32.mrf.mxu0
    %v1742 = vadd.f32 %v1722, %v1741
    %1743 = vdwg.mxu0
    %1744 = vmatpush.msra.mxu0 %v671
    %1745 = vmatpush.msra.mxu0 %v663
    %1746 = vmatpush.msra.mxu0 %v655
    %1747 = vmatpush.msra.mxu0 %v647
    %1748 = vmatpush.msra.mxu0 %v639
    %1749 = vmatpush.msra.mxu0 %v631
    %1750 = vmatpush.msra.mxu0 %v623
    %1751 = vmatpush.msra.mxu0 %v615
    %1752 = vmatpush.msra.mxu0 %v607
    %1753 = vmatpush.msra.mxu0 %v599
    %1754 = vmatpush.msra.mxu0 %v591
    %1755 = vmatpush.msra.mxu0 %v583
    %1756 = vmatpush.msra.mxu0 %v575
    %1757 = vmatpush.msra.mxu0 %v567
    %1758 = vmatpush.msra.mxu0 %v559
    %1759 = vmatpush.msra.mxu0 %v551
    %1760 = vmatmul.f32.gmra.mxu0 %v955
    %v1761 = vpop.f32.mrf.mxu0
    %v1762 = vadd.f32 %v1742, %v1761
    %1763 = vdwg.mxu0
    %1764 = vmatpush.msra.mxu0 %v799
    %1765 = vmatpush.msra.mxu0 %v791
    %1766 = vmatpush.msra.mxu0 %v783
    %1767 = vmatpush.msra.mxu0 %v775
    %1768 = vmatpush.msra.mxu0 %v767
    %1769 = vmatpush.msra.mxu0 %v759
    %1770 = vmatpush.msra.mxu0 %v751
    %1771 = vmatpush.msra.mxu0 %v743
    %1772 = vmatpush.msra.mxu0 %v735
    %1773 = vmatpush.msra.mxu0 %v727
    %1774 = vmatpush.msra.mxu0 %v719
    %1775 = vmatpush.msra.mxu0 %v711
    %1776 = vmatpush.msra.mxu0 %v703
    %1777 = vmatpush.msra.mxu0 %v695
    %1778 = vmatpush.msra.mxu0 %v687
    %1779 = vmatpush.msra.mxu0 %v679
    %1780 = vmatmul.f32.gmra.mxu0 %v956
    %v1781 = vpop.f32.mrf.mxu0
    %v1782 = vadd.f32 %v1762, %v1781
    %1783 = vdwg.mxu0
    %1784 = vmatpush.msra.mxu0 %v927
    %1785 = vmatpush.msra.mxu0 %v919
    %1786 = vmatpush.msra.mxu0 %v911
    %1787 = vmatpush.msra.mxu0 %v903
    %1788 = vmatpush.msra.mxu0 %v895
    %1789 = vmatpush.msra.mxu0 %v887
    %1790 = vmatpush.msra.mxu0 %v879
    %1791 = vmatpush.msra.mxu0 %v871
    %1792 = vmatpush.msra.mxu0 %v863
    %1793 = vmatpush.msra.mxu0 %v855
    %1794 = vmatpush.msra.mxu0 %v847
    %1795 = vmatpush.msra.mxu0 %v839
    %1796 = vmatpush.msra.mxu0 %v831
    %1797 = vmatpush.msra.mxu0 %v823
    %1798 = vmatpush.msra.mxu0 %v815
    %1799 = vmatpush.msra.mxu0 %v807
    %1800 = vmatmul.f32.gmra.mxu0 %v957
    %v1801 = vpop.f32.mrf.mxu0
    %v1802 = vadd.f32 %v1782, %v1801
    %1803 = vdwg.mxu0
    %1804 = vmatpush.msra.mxu0 %v288
    %1805 = vmatpush.msra.mxu0 %v280
    %1806 = vmatpush.msra.mxu0 %v272
    %1807 = vmatpush.msra.mxu0 %v264
    %1808 = vmatpush.msra.mxu0 %v256
    %1809 = vmatpush.msra.mxu0 %v248
    %1810 = vmatpush.msra.mxu0 %v240
    %1811 = vmatpush.msra.mxu0 %v232
    %1812 = vmatpush.msra.mxu0 %v224
    %1813 = vmatpush.msra.mxu0 %v216
    %1814 = vmatpush.msra.mxu0 %v208
    %1815 = vmatpush.msra.mxu0 %v200
    %1816 = vmatpush.msra.mxu0 %v192
    %1817 = vmatpush.msra.mxu0 %v184
    %1818 = vmatpush.msra.mxu0 %v176
    %1819 = vmatpush.msra.mxu0 %v168
    %1820 = vmatmul.f32.gmra.mxu0 %v952
    %v1821 = vpop.f32.mrf.mxu0
    %v1822 = vadd.f32 %v938, %v1821
    %1823 = vdwg.mxu0
    %1824 = vmatpush.msra.mxu0 %v416
    %1825 = vmatpush.msra.mxu0 %v408
    %1826 = vmatpush.msra.mxu0 %v400
    %1827 = vmatpush.msra.mxu0 %v392
    %1828 = vmatpush.msra.mxu0 %v384
    %1829 = vmatpush.msra.mxu0 %v376
    %1830 = vmatpush.msra.mxu0 %v368
    %1831 = vmatpush.msra.mxu0 %v360
    %1832 = vmatpush.msra.mxu0 %v352
    %1833 = vmatpush.msra.mxu0 %v344
    %1834 = vmatpush.msra.mxu0 %v336
    %1835 = vmatpush.msra.mxu0 %v328
    %1836 = vmatpush.msra.mxu0 %v320
    %1837 = vmatpush.msra.mxu0 %v312
    %1838 = vmatpush.msra.mxu0 %v304
    %1839 = vmatpush.msra.mxu0 %v296
    %1840 = vmatmul.f32.gmra.mxu0 %v953
    %v1841 = vpop.f32.mrf.mxu0
    %v1842 = vadd.f32 %v1822, %v1841
    %1843 = vdwg.mxu0
    %1844 = vmatpush.msra.mxu0 %v544
    %1845 = vmatpush.msra.mxu0 %v536
    %1846 = vmatpush.msra.mxu0 %v528
    %1847 = vmatpush.msra.mxu0 %v520
    %1848 = vmatpush.msra.mxu0 %v512
    %1849 = vmatpush.msra.mxu0 %v504
    %1850 = vmatpush.msra.mxu0 %v496
    %1851 = vmatpush.msra.mxu0 %v488
    %1852 = vmatpush.msra.mxu0 %v480
    %1853 = vmatpush.msra.mxu0 %v472
    %1854 = vmatpush.msra.mxu0 %v464
    %1855 = vmatpush.msra.mxu0 %v456
    %1856 = vmatpush.msra.mxu0 %v448
    %1857 = vmatpush.msra.mxu0 %v440
    %1858 = vmatpush.msra.mxu0 %v432
    %1859 = vmatpush.msra.mxu0 %v424
    %1860 = vmatmul.f32.gmra.mxu0 %v954
    %v1861 = vpop.f32.mrf.mxu0
    %v1862 = vadd.f32 %v1842, %v1861
    %1863 = vdwg.mxu0
    %1864 = vmatpush.msra.mxu0 %v672
    %1865 = vmatpush.msra.mxu0 %v664
    %1866 = vmatpush.msra.mxu0 %v656
    %1867 = vmatpush.msra.mxu0 %v648
    %1868 = vmatpush.msra.mxu0 %v640
    %1869 = vmatpush.msra.mxu0 %v632
    %1870 = vmatpush.msra.mxu0 %v624
    %1871 = vmatpush.msra.mxu0 %v616
    %1872 = vmatpush.msra.mxu0 %v608
    %1873 = vmatpush.msra.mxu0 %v600
    %1874 = vmatpush.msra.mxu0 %v592
    %1875 = vmatpush.msra.mxu0 %v584
    %1876 = vmatpush.msra.mxu0 %v576
    %1877 = vmatpush.msra.mxu0 %v568
    %1878 = vmatpush.msra.mxu0 %v560
    %1879 = vmatpush.msra.mxu0 %v552
    %1880 = vmatmul.f32.gmra.mxu0 %v955
    %v1881 = vpop.f32.mrf.mxu0
    %v1882 = vadd.f32 %v1862, %v1881
    %1883 = vdwg.mxu0
    %1884 = vmatpush.msra.mxu0 %v800
    %1885 = vmatpush.msra.mxu0 %v792
    %1886 = vmatpush.msra.mxu0 %v784
    %1887 = vmatpush.msra.mxu0 %v776
    %1888 = vmatpush.msra.mxu0 %v768
    %1889 = vmatpush.msra.mxu0 %v760
    %1890 = vmatpush.msra.mxu0 %v752
    %1891 = vmatpush.msra.mxu0 %v744
    %1892 = vmatpush.msra.mxu0 %v736
    %1893 = vmatpush.msra.mxu0 %v728
    %1894 = vmatpush.msra.mxu0 %v720
    %1895 = vmatpush.msra.mxu0 %v712
    %1896 = vmatpush.msra.mxu0 %v704
    %1897 = vmatpush.msra.mxu0 %v696
    %1898 = vmatpush.msra.mxu0 %v688
    %1899 = vmatpush.msra.mxu0 %v680
    %1900 = vmatmul.f32.gmra.mxu0 %v956
    %v1901 = vpop.f32.mrf.mxu0
    %v1902 = vadd.f32 %v1882, %v1901
    %1903 = vdwg.mxu0
    %1904 = vmatpush.msra.mxu0 %v928
    %1905 = vmatpush.msra.mxu0 %v920
    %1906 = vmatpush.msra.mxu0 %v912
    %1907 = vmatpush.msra.mxu0 %v904
    %1908 = vmatpush.msra.mxu0 %v896
    %1909 = vmatpush.msra.mxu0 %v888
    %1910 = vmatpush.msra.mxu0 %v880
    %1911 = vmatpush.msra.mxu0 %v872
    %1912 = vmatpush.msra.mxu0 %v864
    %1913 = vmatpush.msra.mxu0 %v856
    %1914 = vmatpush.msra.mxu0 %v848
    %1915 = vmatpush.msra.mxu0 %v840
    %1916 = vmatpush.msra.mxu0 %v832
    %1917 = vmatpush.msra.mxu0 %v824
    %1918 = vmatpush.msra.mxu0 %v816
    %1919 = vmatpush.msra.mxu0 %v808
    %1920 = vmatmul.f32.gmra.mxu0 %v957
    %v1921 = vpop.f32.mrf.mxu0
    %v1922 = vadd.f32 %v1902, %v1921
    %1923 = vdwg.mxu0
    %v1932 = vrot.slane %v1202, 6
    %v1933 = vrot.slane %v1322, 4
    %v1934 = vrot.slane %v1442, 2
    %v1935 = vrot.slane %v1682, 6
    %v1936 = vrot.slane %v1802, 4
    %v1937 = vrot.slane %v1922, 2
    %vm1938 = vcmask 1041408
    %v1939 = vsel %vm1938, %v1082, %v1932
    %vm1940 = vcmask 1045508
    %v1941 = vsel %vm1940, %v1933, %v1934
    %vm1942 = vcmask 1043456
    %v1943 = vsel %vm1942, %v1939, %v1941
    %v1944 = vsel %vm1938, %v1562, %v1935
    %v1945 = vsel %vm1940, %v1936, %v1937
    %v1946 = vsel %vm1942, %v1944, %v1945
    %1949 = vst [vmem:[%s7] sm:$0xff] %v1943
    %1950 = vst [vmem:[%s7 + $0x8] sm:$0xff] %v1946
    // Predicated region
    $region42: #{prepend_tokens.1} parent=1 // pred_check
      _
    $region43: #{prepend_tokens.1} parent=1 // pred_check_branch
      %1952 = sbr.rel (0) target = $region45
    $region44: #{prepend_tokens.1} parent=1 // pred_region
      _
    $region45: #{prepend_tokens.1} parent=1 // pred_fallthru
      _
    // Predicated region
    $region46: #{prepend_tokens.1} parent=1 // pred_check
      _
    $region47: #{prepend_tokens.1} parent=1 // pred_check_branch
      %1954 = sbr.rel (0) target = $region49
    $region48: #{prepend_tokens.1} parent=1 // pred_region
      _
    $region49: #{prepend_tokens.1} parent=1 // pred_fallthru
      _
    // Predicated region
    $region50: #{prepend_tokens.1} parent=1 // pred_check
      _
    $region51: #{prepend_tokens.1} parent=1 // pred_check_branch
      %1956 = sbr.rel (0) target = $region53
    $region52: #{prepend_tokens.1} parent=1 // pred_region
      _
    $region53: #{prepend_tokens.1} parent=1 // pred_fallthru
      _
    // Predicated region
    $region54: #{prepend_tokens.1} parent=1 // pred_check
      _
    $region55: #{prepend_tokens.1} parent=1 // pred_check_branch
      %1958 = sbr.rel (0) target = $region57
    $region56: #{prepend_tokens.1} parent=1 // pred_region
      _
    $region57: #{prepend_tokens.1} parent=1 // pred_fallthru
      _
    %1959 = vsyncpa [#allocation3], 1
    %1960 = vsyncpa [#allocation5], 1
    %1961 = vsyncpa [#allocation8], 1

</llo_original>
